<compile_context>
chip_gen: v6e
topology: v6e:2x2x1
jax: 0.10.0
libtpu: 0.0.40
codegen_flags: <defaults>
</compile_context>

<pallas_src>
import math
from functools import partial

import jax
import jax.numpy as jnp
from jax import lax
from jax.experimental import pallas as pl
from jax.experimental.pallas import tpu as pltpu

_PAD_COORD = 1.0e6  # coordinate for padded points: far outside any crop.


def _round_up(x, k):
    return ((x + k - 1) // k) * k


def _vmem_capacity_bytes():
    """Per-core VMEM capacity; conservative 64 MiB fallback (v7x-safe)."""
    try:
        cap = int(pltpu.get_tpu_info().vmem_capacity_bytes)
        if cap > 0:
            return cap
    except Exception:
        pass
    try:
        kind = jax.devices()[0].device_kind.lower()
        if ("v5" in kind) or ("v6" in kind):
            return 128 * 1024 * 1024
    except Exception:
        pass
    return 64 * 1024 * 1024


def _choose_tile(c2, m_pad, batch, vmem_cap):
    """Pixel-axis tile (lanes), multiple of 128.

    Sized from the real live set of kernel 2 (~8 (m_pad, T) f32 slabs: temps +
    double-buffered output) against the per-generation VMEM capacity; prefers
    tiles that exactly divide round_up(c2, 128) (no junk columns written) and
    guarantees >=2 grid steps for single-image calls (v7x megacore).
    """
    c2_128 = _round_up(c2, 128)
    n128 = c2_128 // 128
    budget = int(vmem_cap) * 11 // 16                       # ~68% of VMEM for slabs
    lane_budget = max(128, (budget // (4 * 8 * max(m_pad, 8)) // 128) * 128)

    div_tiles = [d * 128 for d in range(1, n128 + 1)
                 if n128 % d == 0 and d * 128 <= lane_budget]
    tile = max(div_tiles) if div_tiles else 128

    # Divisors too coarse (e.g. prime n128): accept a small padded tail instead
    # of dropping to a tiny tile (tile-sweep knee is ~512 lanes).
    if tile < 512 <= lane_budget and lane_budget >= 2 * tile and lane_budget < c2_128:
        tile = lane_budget

    # Single-image call: keep >=2 parallel grid steps so both v7x cores get work.
    if batch == 1 and tile >= c2_128 and n128 >= 2:
        proper = [d * 128 for d in range(1, n128) if n128 % d == 0]
        tile = max(proper) if proper else ((n128 + 1) // 2) * 128

    return min(tile, max(c2_128, 128))


# ---------------------------------------------------------------------------
# Kernel 1: per-point sigma estimation (mean of kNN distances).  grid = (B,).
# Emits one packed (m_pad, 8) per-point tensor consumed by kernel 2.
# TODO(synk): for very large point counts (m >> ~1.5k on v7x / ~2.5k on v5e-v6e)
# the (m_pad, m_pad) distance matrix should itself be tiled; typical
# crowd-counting crops fit comfortably under the explicit VMEM limit set below.
# ---------------------------------------------------------------------------
def _make_sigma_kernel(m_pad, fg_sigma, bg_ratio, knn):
    inv_knn = 1.0 / float(knn)
    inv_100fg = 1.0 / (float(fg_sigma) * 100.0)

    def kernel(nvalid_ref, st_ref, xc_ref, yc_ref, xr_ref, yr_ref, pk_ref):
        b = pl.program_id(0)
        n_valid = nvalid_ref[b]              # number of real (non-padded) points
        st = st_ref[b]                       # st_size of this image

        xc = xc_ref[...]                     # (m_pad, 1)
        yc = yc_ref[...]
        xr = xr_ref[...]                     # (1, m_pad)
        yr = yr_ref[...]

        dx = xc - xr
        dy = yc - yr
        d2 = dx * dx + dy * dy               # SQUARED distances (no full-matrix sqrt)

        col = lax.broadcasted_iota(jnp.int32, (m_pad, m_pad), 1)
        row = lax.broadcasted_iota(jnp.int32, (m_pad, m_pad), 0)
        # Mask the diagonal (self) and padded columns once, then peel `knn` mins.
        work = jnp.where((col >= n_valid) | (col == row), jnp.inf, d2)

        knn_sum = jnp.zeros((m_pad, 1), jnp.float32)
        for k in range(knn):
            mn = jnp.min(work, axis=1, keepdims=True)        # squared min
            dk = jnp.sqrt(jnp.maximum(mn, 1e-12))            # sqrt only the (m,1) min
            knn_sum = knn_sum + jnp.where(mn < jnp.inf, dk, 0.0)  # <knn nbrs -> add 0
            if k + 1 < knn:
                is_min = work <= mn
                idx = jnp.min(jnp.where(is_min, col, m_pad), axis=1, keepdims=True)
                work = jnp.where(col == idx, jnp.inf, work)   # remove one occurrence

        nn = jnp.clip(knn_sum * inv_knn, 10.0, 100.0) * fg_sigma   # sqrt(sigma^2)
        sigma2 = nn * nn
        ninv = -0.5 / sigma2                                  # -1/(2*sigma^2)
        nlog = -jnp.log(nn)                                   # -log(sqrt(sigma^2))
        sig = (st * bg_ratio * inv_100fg) * nn                # st*ratio*sigma/(fg*100)
        zeros3 = jnp.zeros((m_pad, 3), jnp.float32)
        pk_ref[...] = jnp.concatenate([xc, yc, ninv, nlog, sig, zeros3], axis=1)

    return kernel


# ---------------------------------------------------------------------------
# Kernel 2: probability map, tiled over (image, pixel-tile).
# ---------------------------------------------------------------------------
def _make_prob_kernel(bg_sigma, use_bg):
    bg_s2 = float(bg_sigma) ** 2
    neg_inv_2bg = -0.5 / bg_s2
    neg_log_sqrt_bg = -0.5 * math.log(bg_s2)

    def _fg(pk, cx, cy):
        xc = pk[:, 0:1]                      # (m_pad, 1)
        yc = pk[:, 1:2]
        ninv = pk[:, 2:3]
        nlog = pk[:, 3:4]
        dx = xc - cx
        dy = yc - cy
        dis = dx * dx + dy * dy              # (m_pad, T), >= 0 by construction
        return dis, dis * ninv + nlog

    if use_bg:
        def kernel(pk_ref, cx_ref, cy_ref, prob_ref, bg_ref):
            pk = pk_ref[...]                 # (m_pad, 8)
            dis, fg_norm = _fg(pk, cx_ref[...], cy_ref[...])
            sig = pk[:, 4:5]

            min_dis = jnp.min(dis, axis=0, keepdims=True)            # (1, T)
            # masked-min gather of the pre-scaled sigma at the argmin point
            d = jnp.min(jnp.where(dis <= min_dis, sig, jnp.inf),
                        axis=0, keepdims=True)                       # (1, T)
            diff = d - jnp.sqrt(min_dis)
            bg_norm = (diff * diff) * neg_inv_2bg + neg_log_sqrt_bg

            mx = jnp.maximum(jnp.max(fg_norm, axis=0, keepdims=True), bg_norm)
            e_fg = jnp.exp(fg_norm - mx)
            e_bg = jnp.exp(bg_norm - mx)
            inv = pl.reciprocal(jnp.sum(e_fg, axis=0, keepdims=True) + e_bg,
                                approx=False)                        # exact
            prob_ref[...] = (e_fg * inv).astype(prob_ref.dtype)
            bg_ref[...] = (e_bg * inv).astype(bg_ref.dtype)          # 1-row output
        return kernel

    def kernel(pk_ref, cx_ref, cy_ref, prob_ref):
        pk = pk_ref[...]
        _, fg_norm = _fg(pk, cx_ref[...], cy_ref[...])
        mx = jnp.max(fg_norm, axis=0, keepdims=True)
        e_fg = jnp.exp(fg_norm - mx)
        inv = pl.reciprocal(jnp.sum(e_fg, axis=0, keepdims=True), approx=False)
        prob_ref[...] = (e_fg * inv).astype(prob_ref.dtype)

    return kernel


@partial(jax.jit, static_argnames=("m_pad", "tile", "fg_sigma", "bg_sigma",
                                   "bg_ratio", "use_bg", "knn", "out_dtype",
                                   "vmem_cap"))
def _post_prob_batched(nvalid, st, xc, yc, xr, yr, cood_x, cood_y, *,
                       m_pad, tile, fg_sigma, bg_sigma, bg_ratio, use_bg, knn,
                       out_dtype, vmem_cap):
    B = xc.shape[0]
    c2_pad = cood_x.shape[1]
    n_tiles = c2_pad // tile

    # Explicit per-generation VMEM limits (v5e default scoped limit is 16 MiB;
    # v7x only has 64 MiB/TC — make overflow a compile error, not silent spill).
    sigma_vmem = min(vmem_cap * 3 // 4,
                     max(32 << 20, 6 * m_pad * m_pad * 4 + (4 << 20)))
    prob_vmem = min(vmem_cap * 3 // 4,
                    max(32 << 20, 8 * m_pad * tile * 4 + (8 << 20)))

    smem_spec = pl.BlockSpec(memory_space=pltpu.MemorySpace.SMEM)
    col_spec = pl.BlockSpec((None, m_pad, 1), lambda b: (b, 0, 0))
    row_spec = pl.BlockSpec((None, 1, m_pad), lambda b: (b, 0, 0))
    pk_out_spec = pl.BlockSpec((None, m_pad, 8), lambda b: (b, 0, 0))

    packed = pl.pallas_call(
        _make_sigma_kernel(m_pad, fg_sigma, bg_ratio, knn),
        out_shape=jax.ShapeDtypeStruct((B, m_pad, 8), jnp.float32),
        grid=(B,),
        in_specs=[smem_spec, smem_spec, col_spec, col_spec, row_spec, row_spec],
        out_specs=pk_out_spec,
        compiler_params=pltpu.CompilerParams(
            dimension_semantics=("parallel",),
            vmem_limit_bytes=sigma_vmem),
    )(nvalid, st, xc, yc, xr, yr)

    # grid order: B outer, pixel tiles inner -> the t-invariant packed block is
    # fetched once per image.
    pk_spec = pl.BlockSpec((None, m_pad, 8), lambda b, t: (b, 0, 0))
    cood_spec = pl.BlockSpec((1, tile), lambda b, t: (0, t))
    prob_spec = pl.BlockSpec((None, m_pad, tile), lambda b, t: (b, 0, t))

    if use_bg:
        out_shape = (jax.ShapeDtypeStruct((B, m_pad, c2_pad), out_dtype),
                     jax.ShapeDtypeStruct((B, 1, c2_pad), out_dtype))
        out_specs = (prob_spec,
                     pl.BlockSpec((None, 1, tile), lambda b, t: (b, 0, t)))
    else:
        out_shape = jax.ShapeDtypeStruct((B, m_pad, c2_pad), out_dtype)
        out_specs = prob_spec

    out = pl.pallas_call(
        _make_prob_kernel(bg_sigma, use_bg),
        out_shape=out_shape,
        grid=(B, n_tiles),
        in_specs=[pk_spec, cood_spec, cood_spec],
        out_specs=out_specs,
        compiler_params=pltpu.CompilerParams(
            dimension_semantics=("parallel", "parallel"),
            vmem_limit_bytes=prob_vmem),
    )(packed, cood_x, cood_y)

    if use_bg:
        return out[0], out[1]
    return out, None


class PostProbPallas:
    """JAX/Pallas equivalent of Post_Prob (forward).

    `prob_dtype=jnp.bfloat16` halves output HBM traffic (useful on v5e/v6e where
    the prob kernel is store-bound) — softmax math stays in f32 either way.
    """

    def __init__(self, fg_sigma, bg_sigma, c_size, stride, background_ratio,
                 use_background, kernel_NN, prob_dtype=jnp.float32):
        assert c_size % stride == 0
        self.fg_sigma = float(fg_sigma)
        self.bg_sigma = float(bg_sigma)
        self.bg_ratio = float(background_ratio)
        self.use_bg = bool(use_background)
        self.knn = int(kernel_NN)
        self.prob_dtype = prob_dtype
        C = c_size // stride
        self.C = C
        self.C2 = C * C
        cood = jnp.arange(0, c_size, stride, dtype=jnp.float32) + stride / 2.0  # (C,)
        # flattened pixel coords, j = y_idx * C + x_idx (matches torch view((N,C,C)))
        self.cood_x = jnp.tile(cood, C).reshape(1, self.C2)
        self.cood_y = jnp.repeat(cood, C).reshape(1, self.C2)

    def __call__(self, points_list, st_sizes):
        prob_list = [None] * len(points_list)
        idxs = [i for i, p in enumerate(points_list) if int(p.shape[0]) > 0]
        if not idxs:
            return prob_list

        ms = [int(points_list[i].shape[0]) for i in idxs]
        m_pad = max(8, _round_up(max(ms), 8))
        B = len(idxs)
        vmem_cap = _vmem_capacity_bytes()
        tile = _choose_tile(self.C2, m_pad, B, vmem_cap)
        c2_pad = _round_up(self.C2, tile)

        pts_pad = []
        for i in idxs:
            p = jnp.asarray(points_list[i], jnp.float32)
            pts_pad.append(jnp.pad(p, ((0, m_pad - p.shape[0]), (0, 0)),
                                   constant_values=_PAD_COORD))
        pts = jnp.stack(pts_pad, axis=0)                        # (B, m_pad, 2)
        xc = pts[:, :, 0:1]                                     # (B, m_pad, 1)
        yc = pts[:, :, 1:2]
        xr = pts[:, :, 0].reshape(B, 1, m_pad)                  # (B, 1, m_pad)
        yr = pts[:, :, 1].reshape(B, 1, m_pad)
        nvalid = jnp.asarray(ms, dtype=jnp.int32)               # (B,)
        st = jnp.stack([jnp.asarray(st_sizes[i], jnp.float32).reshape(())
                        for i in idxs])

        cood_x, cood_y = self.cood_x, self.cood_y
        if c2_pad != self.C2:
            cood_x = jnp.pad(cood_x, ((0, 0), (0, c2_pad - self.C2)))
            cood_y = jnp.pad(cood_y, ((0, 0), (0, c2_pad - self.C2)))

        fg_out, bg_out = _post_prob_batched(
            nvalid, st, xc, yc, xr, yr, cood_x, cood_y,
            m_pad=m_pad, tile=tile, fg_sigma=self.fg_sigma, bg_sigma=self.bg_sigma,
            bg_ratio=self.bg_ratio, use_bg=self.use_bg, knn=self.knn,
            out_dtype=self.prob_dtype, vmem_cap=vmem_cap)

        for k, i in enumerate(idxs):
            m = ms[k]
            fg = fg_out[k, :m, :self.C2]
            if self.use_bg:
                prob = jnp.concatenate([fg, bg_out[k, :, :self.C2]], axis=0)
            else:
                prob = fg
            prob_list[i] = prob
        return prob_list


# ---------------------------------------------------------------------------
# Pure-JAX reference (mirrors the torch code, per-image) for self-checking.
# ---------------------------------------------------------------------------
def _reference_post_prob(points, st_size, cood_row, fg_sigma, bg_sigma, bg_ratio,
                         use_bg, knn):
    points = jnp.asarray(points, jnp.float32)
    m = points.shape[0]
    C = cood_row.shape[1]
    C2 = C * C
    sq = jnp.sum(points ** 2, axis=1, keepdims=True)
    Dm = sq + sq.T - 2.0 * points @ points.T
    Dm = jnp.sqrt(jnp.maximum(Dm, 1e-12))
    Ds = jnp.sort(Dm, axis=1)[:, 1:knn + 1]
    nn = jnp.clip(jnp.sum(Ds, axis=1) / knn, 10.0, 100.0) * fg_sigma
    sigma2 = (nn ** 2)[:, None]
    dismat = jnp.broadcast_to(sigma2, (m, C2))
    if use_bg:
        dismat = jnp.concatenate(
            [dismat, jnp.full((1, C2), bg_sigma ** 2, jnp.float32)], axis=0)
    x = points[:, 0:1]
    y = points[:, 1:2]
    x_dis = -2.0 * x @ cood_row + x * x + cood_row * cood_row
    y_dis = -2.0 * y @ cood_row + y * y + cood_row * cood_row
    dis = (y_dis[:, :, None] + x_dis[:, None, :]).reshape(m, C2)
    if use_bg:
        min_dis = jnp.maximum(jnp.min(dis, axis=0, keepdims=True), 0.0)
        min_idx = jnp.argmin(dis, axis=0)
        scaled = jnp.sqrt(dismat) / (fg_sigma * 100.0)
        gath = scaled[min_idx, jnp.arange(C2)][None, :]
        d = st_size * bg_ratio * gath
        bg_dis = (d - jnp.sqrt(min_dis)) ** 2
        dis = jnp.concatenate([dis, bg_dis], axis=0)
    logits = -dis / (2.0 * dismat) - jnp.log(jnp.sqrt(dismat))
    return jax.nn.softmax(logits, axis=0)


if __name__ == "__main__":
    key = jax.random.PRNGKey(0)
    c_size, stride = 128, 8                  # C = 16, C*C = 256 pixels
    fg_sigma, bg_sigma, bg_ratio, knn = 1.0, 8.0, 0.15, 3

    post_prob = PostProbPallas(fg_sigma, bg_sigma, c_size, stride, bg_ratio,
                               True, knn)

    k1, k2 = jax.random.split(key)
    pts0 = jax.random.uniform(k1, (8, 2), dtype=jnp.float32, minval=0.0,
                              maxval=float(c_size))
    pts1 = jax.random.uniform(k2, (5, 2), dtype=jnp.float32, minval=0.0,
                              maxval=float(c_size))
    empty = jnp.zeros((0, 2), jnp.float32)
    points_list = [pts0, empty, pts1]
    st_sizes = [jnp.float32(c_size)] * 3

    probs = post_prob(points_list, st_sizes)
    probs = [p if p is None else jax.block_until_ready(p) for p in probs]
    assert probs[1] is None

    C2 = (c_size // stride) ** 2
    cood_row = (jnp.arange(0, c_size, stride, dtype=jnp.float32)
                + stride / 2.0).reshape(1, -1)

    for pts, st, prob in zip(points_list, st_sizes, probs):
        if prob is None:
            continue
        m = pts.shape[0]
        assert prob.shape == (m + 1, C2), prob.shape
        assert bool(jnp.all(jnp.isfinite(prob)))
        col_sums = jnp.sum(prob, axis=0)
        assert bool(jnp.all(jnp.abs(col_sums - 1.0) < 5e-3))
        ref = _reference_post_prob(pts, st, cood_row, fg_sigma, bg_sigma,
                                   bg_ratio, True, knn)
        assert bool(jnp.allclose(prob, ref, atol=5e-3, rtol=5e-3)), \
            float(jnp.max(jnp.abs(prob - ref)))

    # single-image call (exercises the >=2-grid-step tile split for v7x megacore)
    probs_single = post_prob([pts1], [jnp.float32(c_size)])
    p1 = jax.block_until_ready(probs_single[0])
    ref1 = _reference_post_prob(pts1, jnp.float32(c_size), cood_row, fg_sigma,
                                bg_sigma, bg_ratio, True, knn)
    assert p1.shape == (pts1.shape[0] + 1, C2)
    assert bool(jnp.allclose(p1, ref1, atol=5e-3, rtol=5e-3))

    # no-background path
    post_prob_nobg = PostProbPallas(fg_sigma, bg_sigma, c_size, stride, bg_ratio,
                                    False, knn)
    probs_nb = post_prob_nobg([pts0, pts1], [jnp.float32(c_size)] * 2)
    for pts, prob in zip([pts0, pts1], probs_nb):
        prob = jax.block_until_ready(prob)
        assert prob.shape == (pts.shape[0], C2)
        ref = _reference_post_prob(pts, jnp.float32(c_size), cood_row, fg_sigma,
                                   bg_sigma, bg_ratio, False, knn)
        assert bool(jnp.allclose(prob, ref, atol=5e-3, rtol=5e-3))

    print("KERNEL_OK")
</pallas_src>

<mosaic_0001>
module attributes {stable_mosaic.version = 11 : i64} {
  func.func @kernel(%arg0: i32, %arg1: memref<2xi32, #tpu.memory_space<smem>>, %arg2: memref<2xf32, #tpu.memory_space<smem>>, %arg3: memref<1x8x1xf32, #tpu.memory_space<vmem>>, %arg4: memref<1x8x1xf32, #tpu.memory_space<vmem>>, %arg5: memref<1x1x8xf32, #tpu.memory_space<vmem>>, %arg6: memref<1x1x8xf32, #tpu.memory_space<vmem>>, %arg7: memref<1x8x8xf32, #tpu.memory_space<vmem>>) attributes {dimension_semantics = [#tpu.dimension_semantics<parallel>], iteration_bounds = array<i64: 2>, scalar_prefetch = 0 : i64, scratch_operands = 0 : i64, tpu.core_type = #tpu.core_type<tc>, window_params = [{transform_indices = @transform_0, window_bounds = array<i64: 2>}, {transform_indices = @transform_1, window_bounds = array<i64: 2>}, {transform_indices = @transform_2, window_bounds = array<i64: 1, 8, 1>}, {transform_indices = @transform_3, window_bounds = array<i64: 1, 8, 1>}, {transform_indices = @transform_4, window_bounds = array<i64: 1, 1, 8>}, {transform_indices = @transform_5, window_bounds = array<i64: 1, 1, 8>}, {transform_indices = @transform_6, window_bounds = array<i64: 1, 8, 8>}]} {
    %0 = arith.index_cast %arg0 : i32 to index
    %1 = memref.load %arg1[%0] : memref<2xi32, #tpu.memory_space<smem>>
    %2 = arith.index_cast %arg0 : i32 to index
    %3 = memref.load %arg2[%2] : memref<2xf32, #tpu.memory_space<smem>>
    %c0 = arith.constant 0 : index
    %c0_0 = arith.constant 0 : index
    %c0_1 = arith.constant 0 : index
    %4 = vector.load %arg3[%c0, %c0_0, %c0_1] : memref<1x8x1xf32, #tpu.memory_space<vmem>>, vector<1x8x1xf32>
    %5 = vector.shape_cast %4 : vector<1x8x1xf32> to vector<8x1xf32>
    %c0_2 = arith.constant 0 : index
    %c0_3 = arith.constant 0 : index
    %c0_4 = arith.constant 0 : index
    %6 = vector.load %arg4[%c0_2, %c0_3, %c0_4] : memref<1x8x1xf32, #tpu.memory_space<vmem>>, vector<1x8x1xf32>
    %7 = vector.shape_cast %6 : vector<1x8x1xf32> to vector<8x1xf32>
    %c0_5 = arith.constant 0 : index
    %c0_6 = arith.constant 0 : index
    %c0_7 = arith.constant 0 : index
    %8 = vector.load %arg5[%c0_5, %c0_6, %c0_7] : memref<1x1x8xf32, #tpu.memory_space<vmem>>, vector<1x1x8xf32>
    %9 = vector.shape_cast %8 : vector<1x1x8xf32> to vector<1x8xf32>
    %c0_8 = arith.constant 0 : index
    %c0_9 = arith.constant 0 : index
    %c0_10 = arith.constant 0 : index
    %10 = vector.load %arg6[%c0_8, %c0_9, %c0_10] : memref<1x1x8xf32, #tpu.memory_space<vmem>>, vector<1x1x8xf32>
    %11 = vector.shape_cast %10 : vector<1x1x8xf32> to vector<1x8xf32>
    %12 = vector.broadcast %5 : vector<8x1xf32> to vector<8x8xf32>
    %13 = vector.broadcast %9 : vector<1x8xf32> to vector<8x8xf32>
    %14 = arith.subf %12, %13 : vector<8x8xf32>
    %15 = vector.broadcast %7 : vector<8x1xf32> to vector<8x8xf32>
    %16 = vector.broadcast %11 : vector<1x8xf32> to vector<8x8xf32>
    %17 = arith.subf %15, %16 : vector<8x8xf32>
    %18 = arith.mulf %14, %14 : vector<8x8xf32>
    %19 = arith.mulf %17, %17 : vector<8x8xf32>
    %20 = arith.addf %18, %19 : vector<8x8xf32>
    %21 = tpu.iota {dimensions = array<i32: 1>} : vector<8x8xi32>
    %22 = tpu.iota {dimensions = array<i32: 0>} : vector<8x8xi32>
    %23 = vector.broadcast %1 : i32 to vector<8x8xi32>
    %24 = arith.cmpi sge, %21, %23 : vector<8x8xi32>
    %25 = arith.cmpi eq, %21, %22 : vector<8x8xi32>
    %26 = arith.ori %24, %25 : vector<8x8xi1>
    %cst = arith.constant 0x7F800000 : f32
    %27 = vector.broadcast %cst : f32 to vector<8x8xf32>
    %28 = arith.select %26, %27, %20 : vector<8x8xi1>, vector<8x8xf32>
    %cst_11 = arith.constant 0.000000e+00 : f32
    %29 = vector.broadcast %cst_11 : f32 to vector<8x1xf32>
    %cst_12 = arith.constant dense<0x7F800000> : vector<8xf32>
    %30 = vector.multi_reduction <minimumf>, %28, %cst_12 [1] : vector<8x8xf32> to vector<8xf32>
    %31 = vector.shape_cast %30 : vector<8xf32> to vector<8x1xf32>
    %cst_13 = arith.constant 9.99999996E-13 : f32
    %32 = vector.broadcast %cst_13 : f32 to vector<8x1xf32>
    %33 = arith.maximumf %31, %32 : vector<8x1xf32>
    %34 = math.sqrt %33 : vector<8x1xf32>
    %cst_14 = arith.constant 0x7F800000 : f32
    %35 = vector.broadcast %cst_14 : f32 to vector<8x1xf32>
    %36 = arith.cmpf olt, %31, %35 : vector<8x1xf32>
    %cst_15 = arith.constant 0.000000e+00 : f32
    %37 = vector.broadcast %cst_15 : f32 to vector<8x1xf32>
    %38 = arith.select %36, %34, %37 : vector<8x1xi1>, vector<8x1xf32>
    %39 = arith.addf %29, %38 : vector<8x1xf32>
    %40 = vector.broadcast %31 : vector<8x1xf32> to vector<8x8xf32>
    %41 = arith.cmpf ole, %28, %40 : vector<8x8xf32>
    %c8_i32 = arith.constant 8 : i32
    %42 = vector.broadcast %c8_i32 : i32 to vector<8x8xi32>
    %43 = arith.select %41, %21, %42 : vector<8x8xi1>, vector<8x8xi32>
    %cst_16 = arith.constant dense<2147483647> : vector<8xi32>
    %44 = vector.multi_reduction <minsi>, %43, %cst_16 [1] : vector<8x8xi32> to vector<8xi32>
    %45 = vector.shape_cast %44 : vector<8xi32> to vector<8x1xi32>
    %46 = vector.broadcast %45 : vector<8x1xi32> to vector<8x8xi32>
    %47 = arith.cmpi eq, %21, %46 : vector<8x8xi32>
    %cst_17 = arith.constant 0x7F800000 : f32
    %48 = vector.broadcast %cst_17 : f32 to vector<8x8xf32>
    %49 = arith.select %47, %48, %28 : vector<8x8xi1>, vector<8x8xf32>
    %cst_18 = arith.constant dense<0x7F800000> : vector<8xf32>
    %50 = vector.multi_reduction <minimumf>, %49, %cst_18 [1] : vector<8x8xf32> to vector<8xf32>
    %51 = vector.shape_cast %50 : vector<8xf32> to vector<8x1xf32>
    %cst_19 = arith.constant 9.99999996E-13 : f32
    %52 = vector.broadcast %cst_19 : f32 to vector<8x1xf32>
    %53 = arith.maximumf %51, %52 : vector<8x1xf32>
    %54 = math.sqrt %53 : vector<8x1xf32>
    %cst_20 = arith.constant 0x7F800000 : f32
    %55 = vector.broadcast %cst_20 : f32 to vector<8x1xf32>
    %56 = arith.cmpf olt, %51, %55 : vector<8x1xf32>
    %cst_21 = arith.constant 0.000000e+00 : f32
    %57 = vector.broadcast %cst_21 : f32 to vector<8x1xf32>
    %58 = arith.select %56, %54, %57 : vector<8x1xi1>, vector<8x1xf32>
    %59 = arith.addf %39, %58 : vector<8x1xf32>
    %60 = vector.broadcast %51 : vector<8x1xf32> to vector<8x8xf32>
    %61 = arith.cmpf ole, %49, %60 : vector<8x8xf32>
    %c8_i32_22 = arith.constant 8 : i32
    %62 = vector.broadcast %c8_i32_22 : i32 to vector<8x8xi32>
    %63 = arith.select %61, %21, %62 : vector<8x8xi1>, vector<8x8xi32>
    %cst_23 = arith.constant dense<2147483647> : vector<8xi32>
    %64 = vector.multi_reduction <minsi>, %63, %cst_23 [1] : vector<8x8xi32> to vector<8xi32>
    %65 = vector.shape_cast %64 : vector<8xi32> to vector<8x1xi32>
    %66 = vector.broadcast %65 : vector<8x1xi32> to vector<8x8xi32>
    %67 = arith.cmpi eq, %21, %66 : vector<8x8xi32>
    %cst_24 = arith.constant 0x7F800000 : f32
    %68 = vector.broadcast %cst_24 : f32 to vector<8x8xf32>
    %69 = arith.select %67, %68, %49 : vector<8x8xi1>, vector<8x8xf32>
    %cst_25 = arith.constant dense<0x7F800000> : vector<8xf32>
    %70 = vector.multi_reduction <minimumf>, %69, %cst_25 [1] : vector<8x8xf32> to vector<8xf32>
    %71 = vector.shape_cast %70 : vector<8xf32> to vector<8x1xf32>
    %cst_26 = arith.constant 9.99999996E-13 : f32
    %72 = vector.broadcast %cst_26 : f32 to vector<8x1xf32>
    %73 = arith.maximumf %71, %72 : vector<8x1xf32>
    %74 = math.sqrt %73 : vector<8x1xf32>
    %cst_27 = arith.constant 0x7F800000 : f32
    %75 = vector.broadcast %cst_27 : f32 to vector<8x1xf32>
    %76 = arith.cmpf olt, %71, %75 : vector<8x1xf32>
    %cst_28 = arith.constant 0.000000e+00 : f32
    %77 = vector.broadcast %cst_28 : f32 to vector<8x1xf32>
    %78 = arith.select %76, %74, %77 : vector<8x1xi1>, vector<8x1xf32>
    %79 = arith.addf %59, %78 : vector<8x1xf32>
    %cst_29 = arith.constant 0.333333343 : f32
    %80 = vector.broadcast %cst_29 : f32 to vector<8x1xf32>
    %81 = arith.mulf %79, %80 : vector<8x1xf32>
    %cst_30 = arith.constant 1.000000e+01 : f32
    %cst_31 = arith.constant 1.000000e+02 : f32
    %82 = vector.broadcast %cst_30 : f32 to vector<8x1xf32>
    %83 = arith.maximumf %82, %81 : vector<8x1xf32>
    %84 = vector.broadcast %cst_31 : f32 to vector<8x1xf32>
    %85 = arith.minimumf %84, %83 : vector<8x1xf32>
    %cst_32 = arith.constant 1.000000e+00 : f32
    %86 = vector.broadcast %cst_32 : f32 to vector<8x1xf32>
    %87 = arith.mulf %85, %86 : vector<8x1xf32>
    %88 = arith.mulf %87, %87 : vector<8x1xf32>
    %cst_33 = arith.constant -5.000000e-01 : f32
    %89 = vector.broadcast %cst_33 : f32 to vector<8x1xf32>
    %90 = arith.divf %89, %88 : vector<8x1xf32>
    %91 = math.log %87 : vector<8x1xf32>
    %cst_34 = arith.constant 0.000000e+00 : f32
    %92 = vector.broadcast %cst_34 : f32 to vector<8x1xf32>
    %93 = arith.subf %92, %91 : vector<8x1xf32>
    %cst_35 = arith.constant 1.500000e-01 : f32
    %94 = arith.mulf %3, %cst_35 : f32
    %cst_36 = arith.constant 0.00999999977 : f32
    %95 = arith.mulf %94, %cst_36 : f32
    %96 = vector.broadcast %95 : f32 to vector<8x1xf32>
    %97 = arith.mulf %96, %87 : vector<8x1xf32>
    %cst_37 = arith.constant 0.000000e+00 : f32
    %98 = vector.broadcast %cst_37 : f32 to vector<8x3xf32>
    %99 = tpu.concatenate %5, %7, %90, %93, %97, %98 in 1 : vector<8x1xf32>, vector<8x1xf32>, vector<8x1xf32>, vector<8x1xf32>, vector<8x1xf32>, vector<8x3xf32> -> vector<8x8xf32>
    %c0_38 = arith.constant 0 : index
    %c0_39 = arith.constant 0 : index
    %c0_40 = arith.constant 0 : index
    %100 = vector.load %arg7[%c0_38, %c0_39, %c0_40] : memref<1x8x8xf32, #tpu.memory_space<vmem>>, vector<1x8x8xf32>
    %101 = vector.shape_cast %100 : vector<1x8x8xf32> to vector<8x8xf32>
    %102 = vector.shape_cast %99 : vector<8x8xf32> to vector<1x8x8xf32>
    tpu.vector_store %arg7[%c0_38, %c0_39, %c0_40], %102 {strides = array<i32>} : memref<1x8x8xf32, #tpu.memory_space<vmem>>, vector<1x8x8xf32>,
    return
  }
  func.func @transform_0(%arg0: i32) -> i32 {
    %c0_i32 = arith.constant 0 : i32
    %c0_i32_0 = arith.constant 0 : i32
    return %c0_i32 : i32
  }
  func.func @transform_1(%arg0: i32) -> i32 {
    %c0_i32 = arith.constant 0 : i32
    %c0_i32_0 = arith.constant 0 : i32
    return %c0_i32 : i32
  }
  func.func @transform_2(%arg0: i32) -> (i32, i32, i32) {
    %c0_i32 = arith.constant 0 : i32
    %c0_i32_0 = arith.constant 0 : i32
    %c0_i32_1 = arith.constant 0 : i32
    return %arg0, %c0_i32, %c0_i32_0 : i32, i32, i32
  }
  func.func @transform_3(%arg0: i32) -> (i32, i32, i32) {
    %c0_i32 = arith.constant 0 : i32
    %c0_i32_0 = arith.constant 0 : i32
    %c0_i32_1 = arith.constant 0 : i32
    return %arg0, %c0_i32, %c0_i32_0 : i32, i32, i32
  }
  func.func @transform_4(%arg0: i32) -> (i32, i32, i32) {
    %c0_i32 = arith.constant 0 : i32
    %c0_i32_0 = arith.constant 0 : i32
    %c0_i32_1 = arith.constant 0 : i32
    return %arg0, %c0_i32, %c0_i32_0 : i32, i32, i32
  }
  func.func @transform_5(%arg0: i32) -> (i32, i32, i32) {
    %c0_i32 = arith.constant 0 : i32
    %c0_i32_0 = arith.constant 0 : i32
    %c0_i32_1 = arith.constant 0 : i32
    return %arg0, %c0_i32, %c0_i32_0 : i32, i32, i32
  }
  func.func @transform_6(%arg0: i32) -> (i32, i32, i32) {
    %c0_i32 = arith.constant 0 : i32
    %c0_i32_0 = arith.constant 0 : i32
    %c0_i32_1 = arith.constant 0 : i32
    return %arg0, %c0_i32, %c0_i32_0 : i32, i32, i32
  }
}

module attributes {stable_mosaic.version = 11 : i64} {
  func.func @kernel(%arg0: i32, %arg1: i32, %arg2: memref<1x8x8xf32, #tpu.memory_space<vmem>>, %arg3: memref<1x256xf32, #tpu.memory_space<vmem>>, %arg4: memref<1x256xf32, #tpu.memory_space<vmem>>, %arg5: memref<1x8x256xf32, #tpu.memory_space<vmem>>, %arg6: memref<1x1x256xf32, #tpu.memory_space<vmem>>) attributes {dimension_semantics = [#tpu.dimension_semantics<parallel>, #tpu.dimension_semantics<parallel>], iteration_bounds = array<i64: 2, 1>, scalar_prefetch = 0 : i64, scratch_operands = 0 : i64, tpu.core_type = #tpu.core_type<tc>, window_params = [{transform_indices = @transform_0, window_bounds = array<i64: 1, 8, 8>}, {transform_indices = @transform_1, window_bounds = array<i64: 1, 256>}, {transform_indices = @transform_2, window_bounds = array<i64: 1, 256>}, {transform_indices = @transform_3, window_bounds = array<i64: 1, 8, 256>}, {transform_indices = @transform_4, window_bounds = array<i64: 1, 1, 256>}]} {
    %c0 = arith.constant 0 : index
    %c0_0 = arith.constant 0 : index
    %c0_1 = arith.constant 0 : index
    %0 = vector.load %arg2[%c0, %c0_0, %c0_1] : memref<1x8x8xf32, #tpu.memory_space<vmem>>, vector<1x8x8xf32>
    %1 = vector.shape_cast %0 : vector<1x8x8xf32> to vector<8x8xf32>
    %c0_2 = arith.constant 0 : index
    %c0_3 = arith.constant 0 : index
    %2 = vector.load %arg3[%c0_2, %c0_3] : memref<1x256xf32, #tpu.memory_space<vmem>>, vector<1x256xf32>
    %c0_4 = arith.constant 0 : index
    %c0_5 = arith.constant 0 : index
    %3 = vector.load %arg4[%c0_4, %c0_5] : memref<1x256xf32, #tpu.memory_space<vmem>>, vector<1x256xf32>
    %4 = vector.extract_strided_slice %1 {offsets = [0, 0], sizes = [8, 1], strides = [1, 1]} : vector<8x8xf32> to vector<8x1xf32>
    %5 = vector.extract_strided_slice %1 {offsets = [0, 1], sizes = [8, 1], strides = [1, 1]} : vector<8x8xf32> to vector<8x1xf32>
    %6 = vector.extract_strided_slice %1 {offsets = [0, 2], sizes = [8, 1], strides = [1, 1]} : vector<8x8xf32> to vector<8x1xf32>
    %7 = vector.extract_strided_slice %1 {offsets = [0, 3], sizes = [8, 1], strides = [1, 1]} : vector<8x8xf32> to vector<8x1xf32>
    %8 = vector.broadcast %4 : vector<8x1xf32> to vector<8x256xf32>
    %9 = vector.broadcast %2 : vector<1x256xf32> to vector<8x256xf32>
    %10 = arith.subf %8, %9 : vector<8x256xf32>
    %11 = vector.broadcast %5 : vector<8x1xf32> to vector<8x256xf32>
    %12 = vector.broadcast %3 : vector<1x256xf32> to vector<8x256xf32>
    %13 = arith.subf %11, %12 : vector<8x256xf32>
    %14 = arith.mulf %10, %10 : vector<8x256xf32>
    %15 = arith.mulf %13, %13 : vector<8x256xf32>
    %16 = arith.addf %14, %15 : vector<8x256xf32>
    %17 = vector.broadcast %6 : vector<8x1xf32> to vector<8x256xf32>
    %18 = arith.mulf %16, %17 : vector<8x256xf32>
    %19 = vector.broadcast %7 : vector<8x1xf32> to vector<8x256xf32>
    %20 = arith.addf %18, %19 : vector<8x256xf32>
    %21 = vector.extract_strided_slice %1 {offsets = [0, 4], sizes = [8, 1], strides = [1, 1]} : vector<8x8xf32> to vector<8x1xf32>
    %cst = arith.constant dense<0x7F800000> : vector<256xf32>
    %22 = vector.multi_reduction <minimumf>, %16, %cst [0] : vector<8x256xf32> to vector<256xf32>
    %23 = vector.shape_cast %22 : vector<256xf32> to vector<1x256xf32>
    %24 = vector.broadcast %23 : vector<1x256xf32> to vector<8x256xf32>
    %25 = arith.cmpf ole, %16, %24 : vector<8x256xf32>
    %cst_6 = arith.constant 0x7F800000 : f32
    %26 = vector.shape_cast %21 : vector<8x1xf32> to vector<8x1xf32>
    %27 = vector.broadcast %26 : vector<8x1xf32> to vector<8x256xf32>
    %28 = vector.broadcast %cst_6 : f32 to vector<8x256xf32>
    %29 = arith.select %25, %27, %28 : vector<8x256xi1>, vector<8x256xf32>
    %cst_7 = arith.constant dense<0x7F800000> : vector<256xf32>
    %30 = vector.multi_reduction <minimumf>, %29, %cst_7 [0] : vector<8x256xf32> to vector<256xf32>
    %31 = vector.shape_cast %30 : vector<256xf32> to vector<1x256xf32>
    %32 = math.sqrt %23 : vector<1x256xf32>
    %33 = arith.subf %31, %32 : vector<1x256xf32>
    %34 = arith.mulf %33, %33 : vector<1x256xf32>
    %cst_8 = arith.constant -7.812500e-03 : f32
    %35 = vector.broadcast %cst_8 : f32 to vector<1x256xf32>
    %36 = arith.mulf %34, %35 : vector<1x256xf32>
    %cst_9 = arith.constant -2.07944155 : f32
    %37 = vector.broadcast %cst_9 : f32 to vector<1x256xf32>
    %38 = arith.addf %36, %37 : vector<1x256xf32>
    %cst_10 = arith.constant dense<0xFF800000> : vector<256xf32>
    %39 = vector.multi_reduction <maximumf>, %20, %cst_10 [0] : vector<8x256xf32> to vector<256xf32>
    %40 = vector.shape_cast %39 : vector<256xf32> to vector<1x256xf32>
    %41 = arith.maximumf %40, %38 : vector<1x256xf32>
    %42 = vector.broadcast %41 : vector<1x256xf32> to vector<8x256xf32>
    %43 = arith.subf %20, %42 : vector<8x256xf32>
    %44 = math.exp %43 : vector<8x256xf32>
    %45 = arith.subf %38, %41 : vector<1x256xf32>
    %46 = math.exp %45 : vector<1x256xf32>
    %cst_11 = arith.constant dense<0.000000e+00> : vector<256xf32>
    %47 = vector.multi_reduction <add>, %44, %cst_11 [0] : vector<8x256xf32> to vector<256xf32>
    %48 = vector.shape_cast %47 : vector<256xf32> to vector<1x256xf32>
    %49 = arith.addf %48, %46 : vector<1x256xf32>
    %50 = tpu.reciprocal %49 : vector<1x256xf32> -> vector<1x256xf32>
    %51 = vector.broadcast %50 : vector<1x256xf32> to vector<8x256xf32>
    %52 = arith.mulf %44, %51 : vector<8x256xf32>
    %c0_12 = arith.constant 0 : index
    %c0_13 = arith.constant 0 : index
    %c0_14 = arith.constant 0 : index
    %53 = vector.load %arg5[%c0_12, %c0_13, %c0_14] : memref<1x8x256xf32, #tpu.memory_space<vmem>>, vector<1x8x256xf32>
    %54 = vector.shape_cast %53 : vector<1x8x256xf32> to vector<8x256xf32>
    %55 = vector.shape_cast %52 : vector<8x256xf32> to vector<1x8x256xf32>
    tpu.vector_store %arg5[%c0_12, %c0_13, %c0_14], %55 {strides = array<i32>} : memref<1x8x256xf32, #tpu.memory_space<vmem>>, vector<1x8x256xf32>,
    %56 = arith.mulf %46, %50 : vector<1x256xf32>
    %c0_15 = arith.constant 0 : index
    %c0_16 = arith.constant 0 : index
    %c0_17 = arith.constant 0 : index
    %57 = vector.load %arg6[%c0_15, %c0_16, %c0_17] : memref<1x1x256xf32, #tpu.memory_space<vmem>>, vector<1x1x256xf32>
    %58 = vector.shape_cast %57 : vector<1x1x256xf32> to vector<1x256xf32>
    %59 = vector.shape_cast %56 : vector<1x256xf32> to vector<1x1x256xf32>
    tpu.vector_store %arg6[%c0_15, %c0_16, %c0_17], %59 {strides = array<i32>} : memref<1x1x256xf32, #tpu.memory_space<vmem>>, vector<1x1x256xf32>,
    return
  }
  func.func @transform_0(%arg0: i32, %arg1: i32) -> (i32, i32, i32) {
    %c0_i32 = arith.constant 0 : i32
    %c0_i32_0 = arith.constant 0 : i32
    %c0_i32_1 = arith.constant 0 : i32
    return %arg0, %c0_i32, %c0_i32_0 : i32, i32, i32
  }
  func.func @transform_1(%arg0: i32, %arg1: i32) -> (i32, i32) {
    %c0_i32 = arith.constant 0 : i32
    %c0_i32_0 = arith.constant 0 : i32
    return %c0_i32, %arg1 : i32, i32
  }
  func.func @transform_2(%arg0: i32, %arg1: i32) -> (i32, i32) {
    %c0_i32 = arith.constant 0 : i32
    %c0_i32_0 = arith.constant 0 : i32
    return %c0_i32, %arg1 : i32, i32
  }
  func.func @transform_3(%arg0: i32, %arg1: i32) -> (i32, i32, i32) {
    %c0_i32 = arith.constant 0 : i32
    %c0_i32_0 = arith.constant 0 : i32
    return %arg0, %c0_i32, %arg1 : i32, i32, i32
  }
  func.func @transform_4(%arg0: i32, %arg1: i32) -> (i32, i32, i32) {
    %c0_i32 = arith.constant 0 : i32
    %c0_i32_0 = arith.constant 0 : i32
    return %arg0, %c0_i32, %arg1 : i32, i32, i32
  }
}

</mosaic_0001>

<llo_original>
// kernel: _post_prob_batched.3
$region0: #{_post_prob_batched.3}
  #allocation0 [shape = 'u32[]', space=smem, size = 0x4, offset = 0x4, fixed_abs, tag = 'smem constant byte address 0x4 - core index']
  #allocation1 [shape = 'u32[144,128]{1,0:T(1,128)}', space=vmem, size = 0x12000, scoped, tag = 'internal scratch']
  %s0 = inlined_call_operand.vmem [shape: f32[2,8,8], index: 0, kind: input, shape index: {}]
  %s1 = inlined_call_operand.vmem [shape: f32[1,256], index: 1, kind: input, shape index: {}]
  %s2 = inlined_call_operand.vmem [shape: f32[1,256], index: 2, kind: input, shape index: {}]
  %s3 = inlined_call_operand.hbm [shape: f32[2,8,256], index: 3, kind: output, shape index: {0}]
  %s4 = inlined_call_operand.hbm [shape: f32[2,1,256], index: 4, kind: output, shape index: {1}]
  %5 = xla_tuple %s3, %s4
  %s6 = sld [smem:[#allocation0]]
  $region53: #{_post_prob_batched.3} parent=0
    _
  %s8 = ssub.s32 1, %s6
  %s9 = scalar_select 0, %s8, %s6
  $region1: #{_post_prob_batched.3} parent=0
    #allocation2 [shape = 'u8[16384]{0}', space=vmem, size = 0x4000, scoped, tag = 'output window, operand 0']
    #allocation3 [shape = 's32[2]{0}', space=sflag, size = 0x8, scoped, tag = 'scoped memory for _post_prob_batched.3']
    #allocation4 [shape = 'u8[2048]{0}', space=vmem, size = 0x800, scoped, tag = 'output window, operand 1']
    #allocation5 [shape = 's32[2]{0}', space=sflag, size = 0x8, scoped, tag = 'scoped memory for _post_prob_batched.3']
    %10 = vsyncpa [#allocation3], 0
    %s11 = scalar_lea.sflag [#allocation3], 1
    %12 = vsyncpa %s11, 0
    %13 = vsyncpa [#allocation5], 0
    %s14 = scalar_lea.sflag [#allocation5], 1
    %15 = vsyncpa %s14, 0
    loop: start=0, step=1, limit=4
    $region2: #{_post_prob_batched.3} parent=1 // loop_pre_header
      _
    $region3: #{_post_prob_batched.3} parent=1 // loop_header
      %s17 = sphi 0, %s21
      %p18 = scmp.ge.s32.totalorder %s17, 4
      %s24 = sphi 0, %s36
      %s25 = sphi 0, %s32
      %s26 = sphi 0, %s24
      %s27 = sphi 0, %s25
      %s28 = sphi 0, %s26
      %s29 = sphi 0, %s27
      %s39 = sphi 0, %s41
      %s42 = sphi 0, %s39
      %s43 = sphi 0, %s42
      %s59 = sphi 0, %s43
      %s65 = sphi 0, %s67
      %s68 = sphi 0, %s65
      %s69 = sphi 0, %s68
      %s85 = sphi 0, %s69
      %s91 = sphi 0, %s93
      %s94 = sphi 0, %s91
      %s95 = sphi 0, %s94
      %s111 = sphi 0, %s95
      %s119 = sphi 0, %s121
      %s122 = sphi 0, %s119
      %s123 = sphi 0, %s122
      %s139 = sphi 0, %s123
      %s147 = sphi 0, %s149
      %s150 = sphi 0, %s147
      %s151 = sphi 0, %s150
      %s167 = sphi 0, %s151
    $region4: #{_post_prob_batched.3} parent=1 // loop_header_branch
      %20 = sbr.rel (%p18) target = $region8
    $region5: #{_post_prob_batched.3} parent=1 // loop_body
      %s22 = ssub.s32 %s17, 1
      %s23 = ssub.s32 %s17, 2
      %s30 = sadd.s32 1, %s25
      %p31 = scmp.ge.s32.totalorder %s30, 1
      %s32 = scalar_select %p31, 0, %s30
      %s33 = sadd.s32 1, %s24
      %s34 = scalar_select %p31, %s33, %s24
      %p35 = scmp.ge.s32.totalorder %s34, 2
      %s36 = scalar_select %p35, 0, %s34
      %s37 = ssub.s32 %s24, %s36
      %p38 = scmp.eq.s32.totalorder %s37, 0
      %s40 = sadd.s32 %s39, 1
      %s41 = scalar_select %p38, %s39, %s40
      %p44 = pneg %p38
      %p45 = scmp.eq.s32.totalorder %s17, 1
      %p46 = por %p44, %p45
      %p47 = scmp.ne.s32.totalorder %s39, %s42
      %p48 = scmp.eq.s32.totalorder %s17, 0
      %p49 = por %p47, %p48
      %p50 = scmp.ne.s32.totalorder %s39, %s42
      %p51 = scmp.eq.s32.totalorder %s22, 1
      %p52 = por %p50, %p51
      %p53 = scmp.ne.s32.totalorder %s42, %s43
      %p54 = scmp.eq.s32.totalorder %s22, 0
      %p55 = por %p53, %p54
      %p56 = scmp.ne.s32.totalorder %s42, %s43
      %p57 = scmp.eq.s32.totalorder %s23, 1
      %p58 = por %p56, %p57
      %p60 = scmp.ne.s32.totalorder %s43, %s59
      %p61 = scmp.eq.s32.totalorder %s23, 0
      %p62 = por %p60, %p61
      %s63 = ssub.s32 %s25, %s32
      %p64 = scmp.eq.s32.totalorder %s63, 0
      %s66 = sadd.s32 %s65, 1
      %s67 = scalar_select %p64, %s65, %s66
      %p70 = pneg %p64
      %p71 = scmp.eq.s32.totalorder %s17, 1
      %p72 = por %p70, %p71
      %p73 = scmp.ne.s32.totalorder %s65, %s68
      %p74 = scmp.eq.s32.totalorder %s17, 0
      %p75 = por %p73, %p74
      %p76 = scmp.ne.s32.totalorder %s65, %s68
      %p77 = scmp.eq.s32.totalorder %s22, 1
      %p78 = por %p76, %p77
      %p79 = scmp.ne.s32.totalorder %s68, %s69
      %p80 = scmp.eq.s32.totalorder %s22, 0
      %p81 = por %p79, %p80
      %p82 = scmp.ne.s32.totalorder %s68, %s69
      %p83 = scmp.eq.s32.totalorder %s23, 1
      %p84 = por %p82, %p83
      %p86 = scmp.ne.s32.totalorder %s69, %s85
      %p87 = scmp.eq.s32.totalorder %s23, 0
      %p88 = por %p86, %p87
      %s89 = ssub.s32 %s25, %s32
      %p90 = scmp.eq.s32.totalorder %s89, 0
      %s92 = sadd.s32 %s91, 1
      %s93 = scalar_select %p90, %s91, %s92
      %p96 = pneg %p90
      %p97 = scmp.eq.s32.totalorder %s17, 1
      %p98 = por %p96, %p97
      %p99 = scmp.ne.s32.totalorder %s91, %s94
      %p100 = scmp.eq.s32.totalorder %s17, 0
      %p101 = por %p99, %p100
      %p102 = scmp.ne.s32.totalorder %s91, %s94
      %p103 = scmp.eq.s32.totalorder %s22, 1
      %p104 = por %p102, %p103
      %p105 = scmp.ne.s32.totalorder %s94, %s95
      %p106 = scmp.eq.s32.totalorder %s22, 0
      %p107 = por %p105, %p106
      %p108 = scmp.ne.s32.totalorder %s94, %s95
      %p109 = scmp.eq.s32.totalorder %s23, 1
      %p110 = por %p108, %p109
      %p112 = scmp.ne.s32.totalorder %s95, %s111
      %p113 = scmp.eq.s32.totalorder %s23, 0
      %p114 = por %p112, %p113
      %s115 = ssub.s32 %s24, %s36
      %s116 = ssub.s32 %s25, %s32
      %s117 = sor.u32 %s115, %s116
      %p118 = scmp.eq.s32.totalorder %s117, 0
      %s120 = sadd.s32 %s119, 1
      %s121 = scalar_select %p118, %s119, %s120
      %p124 = pneg %p118
      %p125 = scmp.eq.s32.totalorder %s17, 1
      %p126 = por %p124, %p125
      %p127 = scmp.ne.s32.totalorder %s119, %s122
      %p128 = scmp.eq.s32.totalorder %s17, 0
      %p129 = por %p127, %p128
      %p130 = scmp.ne.s32.totalorder %s119, %s122
      %p131 = scmp.eq.s32.totalorder %s22, 1
      %p132 = por %p130, %p131
      %p133 = scmp.ne.s32.totalorder %s122, %s123
      %p134 = scmp.eq.s32.totalorder %s22, 0
      %p135 = por %p133, %p134
      %p136 = scmp.ne.s32.totalorder %s122, %s123
      %p137 = scmp.eq.s32.totalorder %s23, 1
      %p138 = por %p136, %p137
      %p140 = scmp.ne.s32.totalorder %s123, %s139
      %p141 = scmp.eq.s32.totalorder %s23, 0
      %p142 = por %p140, %p141
      %s143 = ssub.s32 %s24, %s36
      %s144 = ssub.s32 %s25, %s32
      %s145 = sor.u32 %s143, %s144
      %p146 = scmp.eq.s32.totalorder %s145, 0
      %s148 = sadd.s32 %s147, 1
      %s149 = scalar_select %p146, %s147, %s148
      %p152 = pneg %p146
      %p153 = scmp.eq.s32.totalorder %s17, 1
      %p154 = por %p152, %p153
      %p155 = scmp.ne.s32.totalorder %s147, %s150
      %p156 = scmp.eq.s32.totalorder %s17, 0
      %p157 = por %p155, %p156
      %p158 = scmp.ne.s32.totalorder %s147, %s150
      %p159 = scmp.eq.s32.totalorder %s22, 1
      %p160 = por %p158, %p159
      %p161 = scmp.ne.s32.totalorder %s150, %s151
      %p162 = scmp.eq.s32.totalorder %s22, 0
      %p163 = por %p161, %p162
      %p164 = scmp.ne.s32.totalorder %s150, %s151
      %p165 = scmp.eq.s32.totalorder %s23, 1
      %p166 = por %p164, %p165
      %p168 = scmp.ne.s32.totalorder %s151, %s167
      %p169 = scmp.eq.s32.totalorder %s23, 0
      %p170 = por %p168, %p169
      %p171 = scmp.le.s32.totalorder 1, %s17
      %p172 = scmp.lt.s32.totalorder %s17, 3
      %p173 = pnand %p171, %p172
      %p174 = pneg %p173
      // Predicated region
      $region9: #{_post_prob_batched.3} parent=5 // pred_check
        _
      $region10: #{_post_prob_batched.3} parent=5 // pred_check_branch
        %176 = sbr.rel (%p173) target = $region12
      $region11: #{_post_prob_batched.3} parent=5 // pred_region
        %s177 = ssub.s32 %s17, 1
        // Predicated region
        $region13: #{_post_prob_batched.3} parent=11 // pred_check
          %p178 = pneg %p81
        $region14: #{_post_prob_batched.3} parent=11 // pred_check_branch
          %180 = sbr.rel (%p178) target = $region16
        $region15: #{_post_prob_batched.3} parent=11 // pred_region
          %s181 = smul.u32 2, %s27
          %p182 = scmp.lt.s32.totalorder %s181, 1
          %s183 = scalar_select %p182, %s181, 1
          %s184 = scalar_lea.vmem %s1, %s183
          %s185 = smul.u32 2, %s27
        $region16: #{_post_prob_batched.3} parent=11 // pred_fallthru
          _
        // Predicated region
        $region17: #{_post_prob_batched.3} parent=11 // pred_check
          %p186 = pneg %p107
        $region18: #{_post_prob_batched.3} parent=11 // pred_check_branch
          %188 = sbr.rel (%p186) target = $region20
        $region19: #{_post_prob_batched.3} parent=11 // pred_region
          %s189 = smul.u32 2, %s27
          %p190 = scmp.lt.s32.totalorder %s189, 1
          %s191 = scalar_select %p190, %s189, 1
          %s192 = scalar_lea.vmem %s2, %s191
          %s193 = smul.u32 2, %s27
        $region20: #{_post_prob_batched.3} parent=11 // pred_fallthru
          _
      $region12: #{_post_prob_batched.3} parent=5 // pred_fallthru
        _
      %p194 = scmp.lt.s32.totalorder %s17, 2
      // Predicated region
      $region21: #{_post_prob_batched.3} parent=5 // pred_check
        %p195 = pneg %p194
      $region22: #{_post_prob_batched.3} parent=5 // pred_check_branch
        %197 = sbr.rel (%p195) target = $region24
      $region23: #{_post_prob_batched.3} parent=5 // pred_region
        // Predicated region
        $region25: #{_post_prob_batched.3} parent=23 // pred_check
          %p198 = pneg %p49
        $region26: #{_post_prob_batched.3} parent=23 // pred_check_branch
          %200 = sbr.rel (%p198) target = $region28
        $region27: #{_post_prob_batched.3} parent=23 // pred_region
          %p201 = scmp.lt.s32.totalorder %s24, 1
          %s202 = scalar_select %p201, %s24, 1
          %s203 = smul.addr %s202, 8
          %s204 = scalar_lea.vmem %s0, %s203
        $region28: #{_post_prob_batched.3} parent=23 // pred_fallthru
          _
      $region24: #{_post_prob_batched.3} parent=5 // pred_fallthru
        _
      %p205 = scmp.le.s32.totalorder 1, %s17
      %p206 = scmp.lt.s32.totalorder %s17, 3
      %p207 = pnand %p205, %p206
      %p208 = pneg %p207
      // Predicated region
      $region29: #{_post_prob_batched.3} parent=5 // pred_check
        _
      $region30: #{_post_prob_batched.3} parent=5 // pred_check_branch
        %210 = sbr.rel (%p207) target = $region32
      $region31: #{_post_prob_batched.3} parent=5 // pred_region
        %s211 = ssub.s32 %s17, 1
        %p212 = scmp.lt.s32.totalorder %s26, 1
        %s213 = scalar_select %p212, %s26, 1
        %s214 = smul.addr %s213, 8
        %s215 = scalar_lea.vmem %s0, %s214
        %p216 = pneg %p55
        %p217 = pneg %p52
        %s218 = smul.u32 2, %s27
        %p219 = scmp.lt.s32.totalorder %s218, 1
        %s220 = scalar_select %p219, %s218, 1
        %s221 = scalar_lea.vmem %s1, %s220
        %p222 = pneg %p81
        %p223 = pneg %p78
        %s224 = smul.u32 2, %s27
        %p225 = scmp.lt.s32.totalorder %s224, 1
        %s226 = scalar_select %p225, %s224, 1
        %s227 = scalar_lea.vmem %s2, %s226
        %p228 = pneg %p107
        %p229 = pneg %p104
        %p230 = pneg %p135
        %p231 = pneg %p132
        %s232 = sand.u32 %s122, 1
        %s233 = scalar_lea.sflag [#allocation3], %s232
        %s234 = sand.u32 %s122, 1
        %s235 = smul.addr %s234, 16
        %s236 = scalar_lea.vmem [#allocation2], %s235
        %p237 = pneg %p163
        %p238 = pneg %p160
        %s239 = sand.u32 %s150, 1
        %s240 = scalar_lea.sflag [#allocation5], %s239
        %s241 = sand.u32 %s150, 1
        %s242 = smul.addr %s241, 2
        %s243 = scalar_lea.vmem [#allocation4], %s242
        %p244 = scmp.lt.s32.totalorder %s26, 1
        %s245 = scalar_select %p244, %s26, 1
        %s246 = smul.addr %s245, 8
        %s247 = scalar_lea.vmem %s0, %s246
        %s248 = smul.u32 2, %s27
        %p249 = scmp.lt.s32.totalorder %s248, 1
        %s250 = scalar_select %p249, %s248, 1
        %s251 = scalar_lea.vmem %s1, %s250
        %s252 = smul.u32 2, %s27
        %s253 = smul.u32 2, %s27
        %p254 = scmp.lt.s32.totalorder %s253, 1
        %s255 = scalar_select %p254, %s253, 1
        %s256 = scalar_lea.vmem %s2, %s255
        %s257 = smul.u32 2, %s27
        %s258 = smul.u32 2, %s27
        %s259 = smul.u32 2, %s27
        %v260 = vld [vmem:[%s247] sm:$0xff]
        %v261 = vld [vmem:[%s251] sm:$0x3]
        %v262 = vld [vmem:[%s256] sm:$0x3]
        %264 = vset.pattern.permute.xlu0 0
        %265 = vperm.xlu0 %264, %v260
        %v266 = vpop.permute.xlu0 %265
        %v269 = vlaneseq
        %v270 = vshrl.u32 %v269, 7
        %v271 = vsub.s32 0, %v270
        %v272 = vrot.slane %v261, %v271
        %v273 = vlaneseq
        %v274 = vshrl.u32 %v273, 7
        %v275 = vsub.s32 1, %v274
        %v276 = vrot.slane %v261, %v275
        %v279 = vsub.f32 %v266, %v272
        %v280 = vsub.f32 %v266, %v276
        %281 = vset.pattern.permute.xlu0 1
        %282 = vperm.xlu0 %281, %v260
        %v283 = vpop.permute.xlu0 %282
        %v286 = vlaneseq
        %v287 = vshrl.u32 %v286, 7
        %v288 = vsub.s32 0, %v287
        %v289 = vrot.slane %v262, %v288
        %v290 = vlaneseq
        %v291 = vshrl.u32 %v290, 7
        %v292 = vsub.s32 1, %v291
        %v293 = vrot.slane %v262, %v292
        %v296 = vsub.f32 %v283, %v289
        %v297 = vsub.f32 %v283, %v293
        %v298 = vmul.f32 %v279, %v279
        %v299 = vmul.f32 %v280, %v280
        %v300 = vmul.f32 %v296, %v296
        %v301 = vmul.f32 %v297, %v297
        %v302 = vadd.f32 %v298, %v300
        %v303 = vadd.f32 %v299, %v301
        %304 = vset.pattern.permute.xlu0 2
        %305 = vperm.xlu0 %304, %v260
        %v306 = vpop.permute.xlu0 %305
        %v308 = vmul.f32 %v302, %v306
        %v309 = vmul.f32 %v303, %v306
        %310 = vset.pattern.permute.xlu0 3
        %311 = vperm.xlu0 %310, %v260
        %v312 = vpop.permute.xlu0 %311
        %v314 = vadd.f32 %v308, %v312
        %v315 = vadd.f32 %v309, %v312
        %v316 = vrot.slane %v302, 4
        %v317 = vmin.f32 %v302, %v316
        %v318 = vrot.slane %v317, 2
        %v319 = vmin.f32 %v317, %v318
        %v320 = vrot.slane %v319, 1
        %v321 = vmin.f32 %v319, %v320
        %v322 = vrot.slane %v303, 4
        %v323 = vmin.f32 %v303, %v322
        %v324 = vrot.slane %v323, 2
        %v325 = vmin.f32 %v323, %v324
        %v326 = vrot.slane %v325, 1
        %v327 = vmin.f32 %v325, %v326
        %vm328 = vcmp.le.f32.partialorder %v302, %v321
        %vm329 = vcmp.le.f32.partialorder %v303, %v327
        %330 = vset.pattern.permute.xlu0 4
        %331 = vperm.xlu0 %330, %v260
        %v332 = vpop.permute.xlu0 %331
        %v334 = vsel %vm328, %v332, inf
        %v335 = vsel %vm329, %v332, inf
        %v336 = vrot.slane %v334, 4
        %v337 = vmin.f32 %v334, %v336
        %v338 = vrot.slane %v337, 2
        %v339 = vmin.f32 %v337, %v338
        %v340 = vrot.slane %v339, 1
        %v341 = vmin.f32 %v339, %v340
        %v342 = vrot.slane %v335, 4
        %v343 = vmin.f32 %v335, %v342
        %v344 = vrot.slane %v343, 2
        %v345 = vmin.f32 %v343, %v344
        %v346 = vrot.slane %v345, 1
        %v347 = vmin.f32 %v345, %v346
        %v348 = vrsqrt.pop %v321
        %v349 = vmul.f32 %v321, %v348
        %vm350 = vcmp.eq.f32.partialorder %v321, inf
        %v351 = vsel %vm350, %v321, %v349
        %vm352 = vcmp.eq.f32.partialorder %v321, 0.0
        %v353 = vand.u32 %v321, 2147483648
        %v354 = vsel %vm352, %v353, %v351
        %v355 = vrsqrt.pop %v327
        %v356 = vmul.f32 %v327, %v355
        %vm357 = vcmp.eq.f32.partialorder %v327, inf
        %v358 = vsel %vm357, %v327, %v356
        %vm359 = vcmp.eq.f32.partialorder %v327, 0.0
        %v360 = vand.u32 %v327, 2147483648
        %v361 = vsel %vm359, %v360, %v358
        %v362 = vsub.f32 %v341, %v354
        %v363 = vsub.f32 %v347, %v361
        %v364 = vmul.f32 %v362, %v362
        %v365 = vmul.f32 %v363, %v363
        %v366 = vmul.f32 %v364, -0.0078125
        %v367 = vmul.f32 %v365, -0.0078125
        %v368 = vadd.f32 %v366, -2.0794415
        %v369 = vadd.f32 %v367, -2.0794415
        %v370 = vrot.slane %v314, 4
        %v371 = vmax.f32 %v314, %v370
        %v372 = vrot.slane %v371, 2
        %v373 = vmax.f32 %v371, %v372
        %v374 = vrot.slane %v373, 1
        %v375 = vmax.f32 %v373, %v374
        %v376 = vrot.slane %v315, 4
        %v377 = vmax.f32 %v315, %v376
        %v378 = vrot.slane %v377, 2
        %v379 = vmax.f32 %v377, %v378
        %v380 = vrot.slane %v379, 1
        %v381 = vmax.f32 %v379, %v380
        %v382 = vmax.f32 %v375, %v368
        %v383 = vmax.f32 %v381, %v369
        %v384 = vsub.f32 %v314, %v382
        %v385 = vsub.f32 %v315, %v383
        %v386 = vmul.f32 %v384, 1.442695
        %v387 = vpow.pop %v386
        %v388 = vmul.f32 %v385, 1.442695
        %v389 = vpow.pop %v388
        %v390 = vsub.f32 %v368, %v382
        %v391 = vsub.f32 %v369, %v383
        %v392 = vmul.f32 %v390, 1.442695
        %v393 = vpow.pop %v392
        %v394 = vmul.f32 %v391, 1.442695
        %v395 = vpow.pop %v394
        %v396 = vrot.slane %v387, 4
        %v397 = vadd.f32 %v387, %v396
        %v398 = vrot.slane %v397, 2
        %v399 = vadd.f32 %v397, %v398
        %v400 = vrot.slane %v399, 1
        %v401 = vadd.f32 %v399, %v400
        %v402 = vrot.slane %v389, 4
        %v403 = vadd.f32 %v389, %v402
        %v404 = vrot.slane %v403, 2
        %v405 = vadd.f32 %v403, %v404
        %v406 = vrot.slane %v405, 1
        %v407 = vadd.f32 %v405, %v406
        %v408 = vadd.f32 %v401, %v393
        %v409 = vadd.f32 %v407, %v395
        %v410 = vrcp.pop %v408
        %v411 = vrcp.pop %v409
        %v412 = vmul.f32 %v387, %v410
        %v413 = vmul.f32 %v389, %v411
        %414 = vst [vmem:[%s236] sm:$0xff] %v412
        %415 = vst [vmem:[%s236 + $0x8] sm:$0xff] %v413
        %v416 = vmul.f32 %v393, %v410
        %v417 = vmul.f32 %v395, %v411
        %v420 = vcombine.low %v416, %v417
        %v422 = vunpack.c.l.s4 1966171168
        %v423 = vunpack.c.0.s8 %v422
        %v424 = vlaneseq
        %v425 = vshrl.u32 %v424, 7
        %v426 = vsub.s32 %v423, %v425
        %v427 = vrot.slane %v420, %v426
        %v429 = vunpack.c.l.s4 1966171168
        %v430 = vunpack.c.0.s8 %v429
        %v431 = vlaneseq
        %v432 = vshrl.u32 %v431, 7
        %v433 = vsub.s32 %v430, %v432
        %v434 = vrot.slane %v427, %v433
        %v436 = vlaneseq
        %vm437 = vcmp.ge.s32.totalorder %v436, 0
        %vm438 = vcmp.lt.s32.totalorder %v436, 256
        %vm439 = vmand %vm437, %vm438
        %440 = vst.msk [vmem:[%s243] sm:$0x3] %vm439, %v434
        %s441 = sand.u32 %s122, 1
        %s442 = scalar_lea.sflag [#allocation3], %s441
        %s443 = sand.u32 %s122, 1
        %s444 = smul.addr %s443, 16
        %s445 = scalar_lea.vmem [#allocation2], %s444
        %s446 = sand.u32 %s150, 1
        %s447 = scalar_lea.sflag [#allocation5], %s446
        %s448 = sand.u32 %s150, 1
        %s449 = smul.addr %s448, 2
        %s450 = scalar_lea.vmem [#allocation4], %s449
        // Predicated region
        $region33: #{_post_prob_batched.3} parent=31 // pred_check
          %p451 = pneg %p132
        $region34: #{_post_prob_batched.3} parent=31 // pred_check_branch
          %453 = sbr.rel (%p451) target = $region36
        $region35: #{_post_prob_batched.3} parent=31 // pred_region
          %s454 = smul.u32 2, %s27
          %s456 = ssub.s32 256, 256
          %457 = vsyncadd %s442, %s456
          %s458 = smul.addr %s26, 2
          %s459 = sadd.s32 %s454, %s458
          %s460 = smul.addr %s459, 128
          %s461 = scalar_lea.hbm %s3, %s460
          %s463 = sshll.u32 %s445, 4
          %s464 = int_to_ptr.vmem [resolvable:$true] %s463
          %466 = dma.vmem_to_hbm [thread:$0]  %s464, 256, %s461, %s442
        $region36: #{_post_prob_batched.3} parent=31 // pred_fallthru
          _
        // Predicated region
        $region37: #{_post_prob_batched.3} parent=31 // pred_check
          %p467 = pneg %p160
        $region38: #{_post_prob_batched.3} parent=31 // pred_check_branch
          %469 = sbr.rel (%p467) target = $region40
        $region39: #{_post_prob_batched.3} parent=31 // pred_region
          %s470 = smul.u32 2, %s27
          %s472 = ssub.s32 32, 32
          %473 = vsyncadd %s447, %s472
          %s474 = smul.addr %s26, 2
          %s475 = sadd.s32 %s470, %s474
          %s476 = smul.addr %s475, 16
          %s477 = scalar_lea.hbm %s4, %s476
          %s479 = sshll.u32 %s450, 4
          %s480 = int_to_ptr.vmem [resolvable:$true] %s479
          %482 = dma.vmem_to_hbm [thread:$0]  %s480, 32, %s477, %s447
        $region40: #{_post_prob_batched.3} parent=31 // pred_fallthru
          _
      $region32: #{_post_prob_batched.3} parent=5 // pred_fallthru
        _
      %p483 = scmp.le.s32.totalorder 2, %s17
      // Predicated region
      $region41: #{_post_prob_batched.3} parent=5 // pred_check
        %p484 = pneg %p483
      $region42: #{_post_prob_batched.3} parent=5 // pred_check_branch
        %486 = sbr.rel (%p484) target = $region44
      $region43: #{_post_prob_batched.3} parent=5 // pred_region
        %s487 = ssub.s32 %s17, 2
        // Predicated region
        $region45: #{_post_prob_batched.3} parent=43 // pred_check
          %p488 = pneg %p138
        $region46: #{_post_prob_batched.3} parent=43 // pred_check_branch
          %490 = sbr.rel (%p488) target = $region48
        $region47: #{_post_prob_batched.3} parent=43 // pred_region
          %s491 = sand.u32 %s123, 1
          %s492 = scalar_lea.sflag [#allocation3], %s491
          %s493 = sand.u32 %s123, 1
          %s494 = smul.addr %s493, 16
          %s495 = scalar_lea.vmem [#allocation2], %s494
          %496 = dma.done %s492, 256
        $region48: #{_post_prob_batched.3} parent=43 // pred_fallthru
          _
        // Predicated region
        $region49: #{_post_prob_batched.3} parent=43 // pred_check
          %p497 = pneg %p166
        $region50: #{_post_prob_batched.3} parent=43 // pred_check_branch
          %499 = sbr.rel (%p497) target = $region52
        $region51: #{_post_prob_batched.3} parent=43 // pred_region
          %s500 = sand.u32 %s151, 1
          %s501 = scalar_lea.sflag [#allocation5], %s500
          %s502 = sand.u32 %s151, 1
          %s503 = smul.addr %s502, 2
          %s504 = scalar_lea.vmem [#allocation4], %s503
          %505 = dma.done %s501, 32
        $region52: #{_post_prob_batched.3} parent=43 // pred_fallthru
          _
      $region44: #{_post_prob_batched.3} parent=5 // pred_fallthru
        _
    $region6: #{_post_prob_batched.3} parent=1 // loop_footer
      %s21 = sadd.s32 1, %s17
    $region7: #{_post_prob_batched.3} parent=1 // loop_footer_branch
      %16 = sbr.rel target = $region3
    $region8: #{_post_prob_batched.3} parent=1 // loop_exit
      _
    %506 = vsyncpa [#allocation3], 1
    %s507 = scalar_lea.sflag [#allocation3], 1
    %508 = vsyncpa %s507, 1
    %509 = vsyncpa [#allocation5], 1
    %s510 = scalar_lea.sflag [#allocation5], 1
    %511 = vsyncpa %s510, 1

// kernel: _post_prob_batched.2
$region0: #{_post_prob_batched.2}
  #allocation0 [shape = 'u32[]', space=smem, size = 0x4, offset = 0x4, fixed_abs, tag = 'smem constant byte address 0x4 - core index']
  #allocation1 [shape = 'u32[144,128]{1,0:T(1,128)}', space=vmem, size = 0x12000, scoped, tag = 'internal scratch']
  %s0 = inlined_call_operand.vmem [shape: s32[2], index: 0, kind: input, shape index: {}]
  %s1 = inlined_call_operand.vmem [shape: f32[2], index: 1, kind: input, shape index: {}]
  %s2 = inlined_call_operand.vmem [shape: f32[2,8,1], index: 2, kind: input, shape index: {}]
  %s3 = inlined_call_operand.vmem [shape: f32[2,8,1], index: 3, kind: input, shape index: {}]
  %s4 = inlined_call_operand.vmem [shape: f32[2,1,8], index: 4, kind: input, shape index: {}]
  %s5 = inlined_call_operand.vmem [shape: f32[2,1,8], index: 5, kind: input, shape index: {}]
  %s6 = inlined_call_operand.vmem [shape: f32[2,8,8], index: 6, kind: output, shape index: {}]
  %s7 = sld [smem:[#allocation0]]
  $region65: #{_post_prob_batched.2} parent=0
    _
  %s9 = ssub.s32 1, %s7
  %s10 = scalar_select 0, %s9, %s7
  $region1: #{_post_prob_batched.2} parent=0
    #allocation2 [shape = 'u8[512]{0}', space=smem, size = 0x200, scoped, tag = 'input window, operand 0, single buffered']
    #allocation3 [shape = 's32[2]{0}', space=sflag, size = 0x8, scoped, tag = 'scoped memory for _post_prob_batched.2']
    #allocation4 [shape = 'u8[512]{0}', space=smem, size = 0x200, scoped, tag = 'input window, operand 1, single buffered']
    #allocation5 [shape = 's32[1]{0}', space=sflag, size = 0x4, scoped, tag = 'scoped memory for _post_prob_batched.2']
    %11 = vsyncpa [#allocation3], 0
    %12 = vsyncpa [#allocation5], 0
    loop: start=0, step=1, limit=4
    $region2: #{_post_prob_batched.2} parent=1 // loop_pre_header
      _
    $region3: #{_post_prob_batched.2} parent=1 // loop_header
      %s14 = sphi 0, %s18
      %p15 = scmp.ge.s32.totalorder %s14, 4
      %s22 = sphi 0, %s22
      %s24 = sphi 0, %s22
      %s25 = sphi 0, %s24
      %s39 = sphi 0, %s25
      %s43 = sphi 0, %s43
      %s45 = sphi 0, %s43
      %s46 = sphi 0, %s45
      %s60 = sphi 0, %s46
      %s66 = sphi 0, %s68
      %s69 = sphi 0, %s66
      %s70 = sphi 0, %s69
      %s86 = sphi 0, %s70
      %s92 = sphi 0, %s94
      %s95 = sphi 0, %s92
      %s96 = sphi 0, %s95
      %s112 = sphi 0, %s96
      %s118 = sphi 0, %s120
      %s121 = sphi 0, %s118
      %s122 = sphi 0, %s121
      %s138 = sphi 0, %s122
      %s144 = sphi 0, %s146
      %s147 = sphi 0, %s144
      %s148 = sphi 0, %s147
      %s164 = sphi 0, %s148
      %s170 = sphi 0, %s172
      %s173 = sphi 0, %s170
      %s174 = sphi 0, %s173
      %s190 = sphi 0, %s174
    $region4: #{_post_prob_batched.2} parent=1 // loop_header_branch
      %17 = sbr.rel (%p15) target = $region8
    $region5: #{_post_prob_batched.2} parent=1 // loop_body
      %s19 = ssub.s32 %s14, 1
      %s20 = ssub.s32 %s14, 2
      %s21 = sadd.s32 %s14, 1
      %s23 = sadd.s32 %s22, 1
      %p26 = scmp.eq.s32.totalorder %s14, 1
      %p27 = scmp.ne.s32.totalorder %s22, %s24
      %p28 = scmp.eq.s32.totalorder %s14, 0
      %p29 = por %p27, %p28
      %p30 = scmp.ne.s32.totalorder %s22, %s24
      %p31 = scmp.eq.s32.totalorder %s19, 1
      %p32 = por %p30, %p31
      %p33 = scmp.ne.s32.totalorder %s24, %s25
      %p34 = scmp.eq.s32.totalorder %s19, 0
      %p35 = por %p33, %p34
      %p36 = scmp.ne.s32.totalorder %s24, %s25
      %p37 = scmp.eq.s32.totalorder %s20, 1
      %p38 = por %p36, %p37
      %p40 = scmp.ne.s32.totalorder %s25, %s39
      %p41 = scmp.eq.s32.totalorder %s20, 0
      %p42 = por %p40, %p41
      %s44 = sadd.s32 %s43, 1
      %p47 = scmp.eq.s32.totalorder %s14, 1
      %p48 = scmp.ne.s32.totalorder %s43, %s45
      %p49 = scmp.eq.s32.totalorder %s14, 0
      %p50 = por %p48, %p49
      %p51 = scmp.ne.s32.totalorder %s43, %s45
      %p52 = scmp.eq.s32.totalorder %s19, 1
      %p53 = por %p51, %p52
      %p54 = scmp.ne.s32.totalorder %s45, %s46
      %p55 = scmp.eq.s32.totalorder %s19, 0
      %p56 = por %p54, %p55
      %p57 = scmp.ne.s32.totalorder %s45, %s46
      %p58 = scmp.eq.s32.totalorder %s20, 1
      %p59 = por %p57, %p58
      %p61 = scmp.ne.s32.totalorder %s46, %s60
      %p62 = scmp.eq.s32.totalorder %s20, 0
      %p63 = por %p61, %p62
      %s64 = ssub.s32 %s14, %s21
      %p65 = scmp.eq.s32.totalorder %s64, 0
      %s67 = sadd.s32 %s66, 1
      %s68 = scalar_select %p65, %s66, %s67
      %p71 = pneg %p65
      %p72 = scmp.eq.s32.totalorder %s14, 1
      %p73 = por %p71, %p72
      %p74 = scmp.ne.s32.totalorder %s66, %s69
      %p75 = scmp.eq.s32.totalorder %s14, 0
      %p76 = por %p74, %p75
      %p77 = scmp.ne.s32.totalorder %s66, %s69
      %p78 = scmp.eq.s32.totalorder %s19, 1
      %p79 = por %p77, %p78
      %p80 = scmp.ne.s32.totalorder %s69, %s70
      %p81 = scmp.eq.s32.totalorder %s19, 0
      %p82 = por %p80, %p81
      %p83 = scmp.ne.s32.totalorder %s69, %s70
      %p84 = scmp.eq.s32.totalorder %s20, 1
      %p85 = por %p83, %p84
      %p87 = scmp.ne.s32.totalorder %s70, %s86
      %p88 = scmp.eq.s32.totalorder %s20, 0
      %p89 = por %p87, %p88
      %s90 = ssub.s32 %s14, %s21
      %p91 = scmp.eq.s32.totalorder %s90, 0
      %s93 = sadd.s32 %s92, 1
      %s94 = scalar_select %p91, %s92, %s93
      %p97 = pneg %p91
      %p98 = scmp.eq.s32.totalorder %s14, 1
      %p99 = por %p97, %p98
      %p100 = scmp.ne.s32.totalorder %s92, %s95
      %p101 = scmp.eq.s32.totalorder %s14, 0
      %p102 = por %p100, %p101
      %p103 = scmp.ne.s32.totalorder %s92, %s95
      %p104 = scmp.eq.s32.totalorder %s19, 1
      %p105 = por %p103, %p104
      %p106 = scmp.ne.s32.totalorder %s95, %s96
      %p107 = scmp.eq.s32.totalorder %s19, 0
      %p108 = por %p106, %p107
      %p109 = scmp.ne.s32.totalorder %s95, %s96
      %p110 = scmp.eq.s32.totalorder %s20, 1
      %p111 = por %p109, %p110
      %p113 = scmp.ne.s32.totalorder %s96, %s112
      %p114 = scmp.eq.s32.totalorder %s20, 0
      %p115 = por %p113, %p114
      %s116 = ssub.s32 %s14, %s21
      %p117 = scmp.eq.s32.totalorder %s116, 0
      %s119 = sadd.s32 %s118, 1
      %s120 = scalar_select %p117, %s118, %s119
      %p123 = pneg %p117
      %p124 = scmp.eq.s32.totalorder %s14, 1
      %p125 = por %p123, %p124
      %p126 = scmp.ne.s32.totalorder %s118, %s121
      %p127 = scmp.eq.s32.totalorder %s14, 0
      %p128 = por %p126, %p127
      %p129 = scmp.ne.s32.totalorder %s118, %s121
      %p130 = scmp.eq.s32.totalorder %s19, 1
      %p131 = por %p129, %p130
      %p132 = scmp.ne.s32.totalorder %s121, %s122
      %p133 = scmp.eq.s32.totalorder %s19, 0
      %p134 = por %p132, %p133
      %p135 = scmp.ne.s32.totalorder %s121, %s122
      %p136 = scmp.eq.s32.totalorder %s20, 1
      %p137 = por %p135, %p136
      %p139 = scmp.ne.s32.totalorder %s122, %s138
      %p140 = scmp.eq.s32.totalorder %s20, 0
      %p141 = por %p139, %p140
      %s142 = ssub.s32 %s14, %s21
      %p143 = scmp.eq.s32.totalorder %s142, 0
      %s145 = sadd.s32 %s144, 1
      %s146 = scalar_select %p143, %s144, %s145
      %p149 = pneg %p143
      %p150 = scmp.eq.s32.totalorder %s14, 1
      %p151 = por %p149, %p150
      %p152 = scmp.ne.s32.totalorder %s144, %s147
      %p153 = scmp.eq.s32.totalorder %s14, 0
      %p154 = por %p152, %p153
      %p155 = scmp.ne.s32.totalorder %s144, %s147
      %p156 = scmp.eq.s32.totalorder %s19, 1
      %p157 = por %p155, %p156
      %p158 = scmp.ne.s32.totalorder %s147, %s148
      %p159 = scmp.eq.s32.totalorder %s19, 0
      %p160 = por %p158, %p159
      %p161 = scmp.ne.s32.totalorder %s147, %s148
      %p162 = scmp.eq.s32.totalorder %s20, 1
      %p163 = por %p161, %p162
      %p165 = scmp.ne.s32.totalorder %s148, %s164
      %p166 = scmp.eq.s32.totalorder %s20, 0
      %p167 = por %p165, %p166
      %s168 = ssub.s32 %s14, %s21
      %p169 = scmp.eq.s32.totalorder %s168, 0
      %s171 = sadd.s32 %s170, 1
      %s172 = scalar_select %p169, %s170, %s171
      %p175 = pneg %p169
      %p176 = scmp.eq.s32.totalorder %s14, 1
      %p177 = por %p175, %p176
      %p178 = scmp.ne.s32.totalorder %s170, %s173
      %p179 = scmp.eq.s32.totalorder %s14, 0
      %p180 = por %p178, %p179
      %p181 = scmp.ne.s32.totalorder %s170, %s173
      %p182 = scmp.eq.s32.totalorder %s19, 1
      %p183 = por %p181, %p182
      %p184 = scmp.ne.s32.totalorder %s173, %s174
      %p185 = scmp.eq.s32.totalorder %s19, 0
      %p186 = por %p184, %p185
      %p187 = scmp.ne.s32.totalorder %s173, %s174
      %p188 = scmp.eq.s32.totalorder %s20, 1
      %p189 = por %p187, %p188
      %p191 = scmp.ne.s32.totalorder %s174, %s190
      %p192 = scmp.eq.s32.totalorder %s20, 0
      %p193 = por %p191, %p192
      %p194 = scmp.le.s32.totalorder 1, %s14
      %p195 = scmp.lt.s32.totalorder %s14, 3
      %p196 = pnand %p194, %p195
      %p197 = pneg %p196
      // Predicated region
      $region9: #{_post_prob_batched.2} parent=5 // pred_check
        _
      $region10: #{_post_prob_batched.2} parent=5 // pred_check_branch
        %199 = sbr.rel (%p196) target = $region12
      $region11: #{_post_prob_batched.2} parent=5 // pred_region
        %s200 = ssub.s32 %s14, 1
        // Predicated region
        $region13: #{_post_prob_batched.2} parent=11 // pred_check
          %p201 = pneg %p35
        $region14: #{_post_prob_batched.2} parent=11 // pred_check_branch
          %203 = sbr.rel (%p201) target = $region16
        $region15: #{_post_prob_batched.2} parent=11 // pred_region
          %s205 = ssub.s32 16, 16
          %206 = vsyncadd [#allocation3], %s205
          %s208 = sshll.u32 %s0, 4
          %s209 = int_to_ptr.vmem [resolvable:$true] %s208
          %211 = dma.vmem_to_smem %s209, 16, [#allocation2], [#allocation3]
        $region16: #{_post_prob_batched.2} parent=11 // pred_fallthru
          _
        // Predicated region
        $region17: #{_post_prob_batched.2} parent=11 // pred_check
          %p212 = pneg %p56
        $region18: #{_post_prob_batched.2} parent=11 // pred_check_branch
          %214 = sbr.rel (%p212) target = $region20
        $region19: #{_post_prob_batched.2} parent=11 // pred_region
          %s216 = ssub.s32 16, 16
          %217 = vsyncadd [#allocation5], %s216
          %s219 = sshll.u32 %s1, 4
          %s220 = int_to_ptr.vmem [resolvable:$true] %s219
          %222 = dma.vmem_to_smem %s220, 16, [#allocation4], [#allocation5]
        $region20: #{_post_prob_batched.2} parent=11 // pred_fallthru
          _
      $region12: #{_post_prob_batched.2} parent=5 // pred_fallthru
        _
      %p223 = scmp.lt.s32.totalorder %s14, 2
      // Predicated region
      $region21: #{_post_prob_batched.2} parent=5 // pred_check
        %p224 = pneg %p223
      $region22: #{_post_prob_batched.2} parent=5 // pred_check_branch
        %226 = sbr.rel (%p224) target = $region24
      $region23: #{_post_prob_batched.2} parent=5 // pred_region
        // Predicated region
        $region25: #{_post_prob_batched.2} parent=23 // pred_check
          %p227 = pneg %p76
        $region26: #{_post_prob_batched.2} parent=23 // pred_check_branch
          %229 = sbr.rel (%p227) target = $region28
        $region27: #{_post_prob_batched.2} parent=23 // pred_region
          %p230 = scmp.lt.s32.totalorder %s14, 1
          %s231 = scalar_select %p230, %s14, 1
          %s232 = smul.addr %s231, 8
          %s233 = scalar_lea.vmem %s2, %s232
        $region28: #{_post_prob_batched.2} parent=23 // pred_fallthru
          _
        // Predicated region
        $region29: #{_post_prob_batched.2} parent=23 // pred_check
          %p234 = pneg %p102
        $region30: #{_post_prob_batched.2} parent=23 // pred_check_branch
          %236 = sbr.rel (%p234) target = $region32
        $region31: #{_post_prob_batched.2} parent=23 // pred_region
          %p237 = scmp.lt.s32.totalorder %s14, 1
          %s238 = scalar_select %p237, %s14, 1
          %s239 = smul.addr %s238, 8
          %s240 = scalar_lea.vmem %s3, %s239
        $region32: #{_post_prob_batched.2} parent=23 // pred_fallthru
          _
        // Predicated region
        $region33: #{_post_prob_batched.2} parent=23 // pred_check
          %p241 = pneg %p128
        $region34: #{_post_prob_batched.2} parent=23 // pred_check_branch
          %243 = sbr.rel (%p241) target = $region36
        $region35: #{_post_prob_batched.2} parent=23 // pred_region
          %p244 = scmp.lt.s32.totalorder %s14, 1
          %s245 = scalar_select %p244, %s14, 1
          %s246 = scalar_lea.vmem %s4, %s245
        $region36: #{_post_prob_batched.2} parent=23 // pred_fallthru
          _
        // Predicated region
        $region37: #{_post_prob_batched.2} parent=23 // pred_check
          %p247 = pneg %p154
        $region38: #{_post_prob_batched.2} parent=23 // pred_check_branch
          %249 = sbr.rel (%p247) target = $region40
        $region39: #{_post_prob_batched.2} parent=23 // pred_region
          %p250 = scmp.lt.s32.totalorder %s14, 1
          %s251 = scalar_select %p250, %s14, 1
          %s252 = scalar_lea.vmem %s5, %s251
        $region40: #{_post_prob_batched.2} parent=23 // pred_fallthru
          _
      $region24: #{_post_prob_batched.2} parent=5 // pred_fallthru
        _
      %p253 = scmp.le.s32.totalorder 1, %s14
      %p254 = scmp.lt.s32.totalorder %s14, 3
      %p255 = pnand %p253, %p254
      %p256 = pneg %p255
      // Predicated region
      $region41: #{_post_prob_batched.2} parent=5 // pred_check
        _
      $region42: #{_post_prob_batched.2} parent=5 // pred_check_branch
        %258 = sbr.rel (%p255) target = $region44
      $region43: #{_post_prob_batched.2} parent=5 // pred_region
        %s259 = ssub.s32 %s14, 1
        // Predicated region
        $region45: #{_post_prob_batched.2} parent=43 // pred_check
          %p260 = pneg %p35
        $region46: #{_post_prob_batched.2} parent=43 // pred_check_branch
          %262 = sbr.rel (%p260) target = $region48
        $region47: #{_post_prob_batched.2} parent=43 // pred_region
          %263 = dma.done [#allocation3], 16
        $region48: #{_post_prob_batched.2} parent=43 // pred_fallthru
          _
        // Predicated region
        $region49: #{_post_prob_batched.2} parent=43 // pred_check
          %p264 = pneg %p56
        $region50: #{_post_prob_batched.2} parent=43 // pred_check_branch
          %266 = sbr.rel (%p264) target = $region52
        $region51: #{_post_prob_batched.2} parent=43 // pred_region
          %267 = dma.done [#allocation5], 16
        $region52: #{_post_prob_batched.2} parent=43 // pred_fallthru
          _
        %268 = sfence
        %p269 = pneg %p35
        %p270 = pneg %p32
        %p271 = pneg %p56
        %p272 = pneg %p53
        %p273 = scmp.lt.s32.totalorder %s19, 1
        %s274 = scalar_select %p273, %s19, 1
        %s275 = smul.addr %s274, 8
        %s276 = scalar_lea.vmem %s2, %s275
        %p277 = pneg %p82
        %p278 = pneg %p79
        %p279 = scmp.lt.s32.totalorder %s19, 1
        %s280 = scalar_select %p279, %s19, 1
        %s281 = smul.addr %s280, 8
        %s282 = scalar_lea.vmem %s3, %s281
        %p283 = pneg %p108
        %p284 = pneg %p105
        %p285 = scmp.lt.s32.totalorder %s19, 1
        %s286 = scalar_select %p285, %s19, 1
        %s287 = scalar_lea.vmem %s4, %s286
        %p288 = pneg %p134
        %p289 = pneg %p131
        %p290 = scmp.lt.s32.totalorder %s19, 1
        %s291 = scalar_select %p290, %s19, 1
        %s292 = scalar_lea.vmem %s5, %s291
        %p293 = pneg %p160
        %p294 = pneg %p157
        %p295 = pneg %p186
        %p296 = pneg %p183
        %p297 = scmp.lt.s32.totalorder %s19, 1
        %s298 = scalar_select %p297, %s19, 1
        %s299 = smul.addr %s298, 8
        %s300 = scalar_lea.vmem %s6, %s299
        %p301 = scmp.lt.s32.totalorder %s19, 1
        %s302 = scalar_select %p301, %s19, 1
        %s303 = smul.addr %s302, 8
        %s304 = scalar_lea.vmem %s2, %s303
        %p305 = scmp.lt.s32.totalorder %s19, 1
        %s306 = scalar_select %p305, %s19, 1
        %s307 = smul.addr %s306, 8
        %s308 = scalar_lea.vmem %s3, %s307
        %p309 = scmp.lt.s32.totalorder %s19, 1
        %s310 = scalar_select %p309, %s19, 1
        %s311 = scalar_lea.vmem %s4, %s310
        %p312 = scmp.lt.s32.totalorder %s19, 1
        %s313 = scalar_select %p312, %s19, 1
        %s314 = scalar_lea.vmem %s5, %s313
        %p315 = scmp.lt.s32.totalorder %s19, 1
        %s316 = scalar_select %p315, %s19, 1
        %s317 = smul.addr %s316, 8
        %s318 = scalar_lea.vmem %s6, %s317
        %s319 = sld [smem:[#allocation2 + %s19]]
        %s320 = sld [smem:[#allocation4 + %s19]]
        %v321 = vld [vmem:[%s304] sm:$0xff]
        %v322 = vld [vmem:[%s308] sm:$0xff]
        %v323 = vld [vmem:[%s311] sm:$0x1]
        %v324 = vld [vmem:[%s314] sm:$0x1]
        %326 = vset.pattern.permute.xlu0 0
        %327 = vperm.xlu0 %326, %v321
        %v328 = vpop.permute.xlu0 %327
        %v331 = vlaneseq
        %v332 = vshrl.u32 %v331, 7
        %v333 = vsub.s32 0, %v332
        %v334 = vrot.slane %v323, %v333
        %v336 = vsub.f32 %v328, %v334
        %338 = vset.pattern.permute.xlu0 0
        %339 = vperm.xlu0 %338, %v322
        %v340 = vpop.permute.xlu0 %339
        %v343 = vlaneseq
        %v344 = vshrl.u32 %v343, 7
        %v345 = vsub.s32 0, %v344
        %v346 = vrot.slane %v324, %v345
        %v348 = vsub.f32 %v340, %v346
        %v349 = vmul.f32 %v336, %v336
        %v350 = vmul.f32 %v348, %v348
        %v351 = vadd.f32 %v349, %v350
        %v352 = vlaneseq
        %v353 = vand.u32 %v352, 127
        %v354 = vlaneseq
        %v355 = vshrl.u32 %v354, 7
        %v356 = vstv %s319
        %vm357 = vcmp.ge.s32.totalorder %v353, %v356
        %vm358 = vcmp.eq.s32.totalorder %v353, %v355
        %vm359 = vmor %vm357, %vm358
        %v360 = vsel %vm359, inf, %v351
        %vm361 = vcmask 64512
        %v362 = vsel %vm361, %v360, inf
        %363 = vmin.xlane.f32.xlu0 %v362
        %v364 = vpop.xlane.xlu0 %363
        %v365 = vmax.f32 %v364, 1e-12
        %v366 = vrsqrt.pop %v365
        %v367 = vmul.f32 %v365, %v366
        %vm368 = vcmp.eq.f32.partialorder %v365, inf
        %v369 = vsel %vm368, %v365, %v367
        %vm370 = vcmp.eq.f32.partialorder %v365, 0.0
        %v371 = vand.u32 %v365, 2147483648
        %v372 = vsel %vm370, %v371, %v369
        %vm373 = vcmp.lt.f32.partialorder %v364, inf
        %v374 = vsel %vm373, %v372, 0.0
        %v375 = vadd.f32 %v374, 0.0
        %vm376 = vcmp.le.f32.partialorder %v360, %v364
        %v377 = vsel %vm376, %v353, 8
        %v378 = vsel %vm361, %v377, 2147483647
        %v379 = vand.u32 %v378, 65535
        %v380 = vshra.s32 %v378, 16
        %v381 = vcvt.s32.f32 %v379
        %v382 = vcvt.s32.f32 %v380
        %383 = vmin.xlane.f32.xlu0 %v382
        %v384 = vpop.xlane.xlu0 %383
        %vm385 = vcmp.eq.f32.partialorder %v382, %v384
        %v386 = vsel %vm385, %v381, inf
        %387 = vmin.xlane.f32.xlu0 %v386
        %v388 = vpop.xlane.xlu0 %387
        %v389 = vcvt.f32.s32 %v388
        %v390 = vcvt.f32.s32 %v384
        %v391 = vshll.u32 %v390, 16
        %v392 = vadd.s32 %v391, %v389
        %vm393 = vcmp.eq.s32.totalorder %v353, %v392
        %v394 = vsel %vm393, inf, %v360
        %v395 = vsel %vm361, %v394, inf
        %396 = vmin.xlane.f32.xlu0 %v395
        %v397 = vpop.xlane.xlu0 %396
        %v398 = vmax.f32 %v397, 1e-12
        %v399 = vrsqrt.pop %v398
        %v400 = vmul.f32 %v398, %v399
        %vm401 = vcmp.eq.f32.partialorder %v398, inf
        %v402 = vsel %vm401, %v398, %v400
        %vm403 = vcmp.eq.f32.partialorder %v398, 0.0
        %v404 = vand.u32 %v398, 2147483648
        %v405 = vsel %vm403, %v404, %v402
        %vm406 = vcmp.lt.f32.partialorder %v397, inf
        %v407 = vsel %vm406, %v405, 0.0
        %v408 = vadd.f32 %v375, %v407
        %vm409 = vcmp.le.f32.partialorder %v394, %v397
        %v410 = vsel %vm409, %v353, 8
        %v411 = vsel %vm361, %v410, 2147483647
        %v412 = vand.u32 %v411, 65535
        %v413 = vshra.s32 %v411, 16
        %v414 = vcvt.s32.f32 %v412
        %v415 = vcvt.s32.f32 %v413
        %416 = vmin.xlane.f32.xlu0 %v415
        %v417 = vpop.xlane.xlu0 %416
        %vm418 = vcmp.eq.f32.partialorder %v415, %v417
        %v419 = vsel %vm418, %v414, inf
        %420 = vmin.xlane.f32.xlu0 %v419
        %v421 = vpop.xlane.xlu0 %420
        %v422 = vcvt.f32.s32 %v421
        %v423 = vcvt.f32.s32 %v417
        %v424 = vshll.u32 %v423, 16
        %v425 = vadd.s32 %v424, %v422
        %vm426 = vcmp.eq.s32.totalorder %v353, %v425
        %v427 = vsel %vm426, inf, %v394
        %v428 = vsel %vm361, %v427, inf
        %429 = vmin.xlane.f32.xlu0 %v428
        %v430 = vpop.xlane.xlu0 %429
        %v431 = vmax.f32 %v430, 1e-12
        %v432 = vrsqrt.pop %v431
        %v433 = vmul.f32 %v431, %v432
        %vm434 = vcmp.eq.f32.partialorder %v431, inf
        %v435 = vsel %vm434, %v431, %v433
        %vm436 = vcmp.eq.f32.partialorder %v431, 0.0
        %v437 = vand.u32 %v431, 2147483648
        %v438 = vsel %vm436, %v437, %v435
        %vm439 = vcmp.lt.f32.partialorder %v430, inf
        %v440 = vsel %vm439, %v438, 0.0
        %v441 = vadd.f32 %v408, %v440
        %v442 = vmul.f32 %v441, 0.33333334
        %v443 = vmax.f32 %v442, 10.0
        %v444 = vmin.f32 %v443, 100.0
        %v445 = vmul.f32 %v444, %v444
        %v446 = vrcp.pop %v445
        %v447 = vmul.f32 -0.5, %v446
        %v448 = vlog2.pop %v444
        %v449 = vmul.f32 %v448, 0.6931472
        %v450 = vsub.f32 0.0, %v449
        %s451 = smul.f32 %s320, 0.15
        %s452 = smul.f32 %s451, 0.01
        %v453 = vstv %s452
        %v454 = vmul.f32 %v453, %v444
        %455 = vrot.lane.b32.xlu0 %v322, 1
        %v456 = vpop.permute.xlu0 %455
        %vm458 = vcmask 7168
        %v459 = vsel %vm458, %v321, %v456
        %vm460 = vcmask 15360
        %v461 = vsel %vm460, %v459, %v447
        %vm462 = vcmask 23552
        %v463 = vsel %vm462, %v461, %v450
        %vm464 = vcmask 31744
        %v465 = vsel %vm464, %v463, %v454
        %vm466 = vcmask 39936
        %v467 = vsel %vm466, %v465, 0.0
        %468 = vst.msk [vmem:[%s318] sm:$0xff] %vm361, %v467
        %p469 = scmp.lt.s32.totalorder %s19, 1
        %s470 = scalar_select %p469, %s19, 1
        %s471 = smul.addr %s470, 8
        %s472 = scalar_lea.vmem %s6, %s471
        // Predicated region
        $region53: #{_post_prob_batched.2} parent=43 // pred_check
          %p473 = pneg %p183
        $region54: #{_post_prob_batched.2} parent=43 // pred_check_branch
          %475 = sbr.rel (%p473) target = $region56
        $region55: #{_post_prob_batched.2} parent=43 // pred_region
          _
        $region56: #{_post_prob_batched.2} parent=43 // pred_fallthru
          _
      $region44: #{_post_prob_batched.2} parent=5 // pred_fallthru
        _
      %p476 = scmp.le.s32.totalorder 2, %s14
      // Predicated region
      $region57: #{_post_prob_batched.2} parent=5 // pred_check
        %p477 = pneg %p476
      $region58: #{_post_prob_batched.2} parent=5 // pred_check_branch
        %479 = sbr.rel (%p477) target = $region60
      $region59: #{_post_prob_batched.2} parent=5 // pred_region
        %s480 = ssub.s32 %s14, 2
        // Predicated region
        $region61: #{_post_prob_batched.2} parent=59 // pred_check
          %p481 = pneg %p189
        $region62: #{_post_prob_batched.2} parent=59 // pred_check_branch
          %483 = sbr.rel (%p481) target = $region64
        $region63: #{_post_prob_batched.2} parent=59 // pred_region
          %p484 = scmp.lt.s32.totalorder %s20, 1
          %s485 = scalar_select %p484, %s20, 1
          %s486 = smul.addr %s485, 8
          %s487 = scalar_lea.vmem %s6, %s486
        $region64: #{_post_prob_batched.2} parent=59 // pred_fallthru
          _
      $region60: #{_post_prob_batched.2} parent=5 // pred_fallthru
        _
    $region6: #{_post_prob_batched.2} parent=1 // loop_footer
      %s18 = sadd.s32 1, %s14
    $region7: #{_post_prob_batched.2} parent=1 // loop_footer_branch
      %13 = sbr.rel target = $region3
    $region8: #{_post_prob_batched.2} parent=1 // loop_exit
      _
    %488 = vsyncpa [#allocation3], 1
    %s489 = scalar_lea.sflag [#allocation3], 1
    %490 = vsyncpa %s489, 1
    %491 = vsyncpa [#allocation5], 1

</llo_original>
